<compile_context>
chip_gen: v7x
topology: tpu7x:2x2x1
jax: 0.10.0
libtpu: 0.0.40
codegen_flags: <defaults>
</compile_context>

<pallas_src>
import functools

import jax
import jax.numpy as jnp
from jax.experimental import pallas as pl
from jax.experimental.pallas import tpu as pltpu


def _siamese_kernel(B, N, P, L, D,
                    cidx_ref, embbd_ref, seg_ref, expand_ref, fold_ref,
                    sel_ref, W_ref, b_ref, out_ref):
    # cidx_ref  : (2*MP+SB, L) int32 -- combined one-hot column ids (l*V_pad + vocab_idx)
    # embbd_ref : (L*V_pad, L*D) f32 -- block-diagonal embedding table
    # seg_ref   : (L*D, L)  f32      -- lane-group indicator (segment-sum selector)
    # expand_ref: (L, L*D)  f32      -- seg.T with v folded in
    # fold_ref  : (L*D, D)  f32      -- folds the L lane-groups back down to D
    # sel_ref   : (SB, M2)  f32      -- neighbour weights (w_rootpath..w_data_neighbours)
    # W_ref     : (2D, OUT_pad) f32, b_ref: (1, OUT_pad) f32
    f32 = jnp.float32
    S = 2
    SB = S * B
    M2 = SB * N
    MP = M2 * P
    LD = L * D
    ROWS = cidx_ref.shape[0]
    KDIM = embbd_ref.shape[0]

    # ---- fused embedding lookup: in-kernel one-hot + ONE block-diagonal MXU matmul --------
    cidx = cidx_ref[...]                                                  # (ROWS, L) int32
    col = jax.lax.broadcasted_iota(jnp.int32, (ROWS, KDIM), 1)
    oh = jnp.zeros((ROWS, KDIM), f32)
    for l in range(L):                                                    # L=4 compares (VPU)
        oh = oh + (cidx[:, l:l + 1] == col).astype(f32)
    g = jnp.dot(oh, embbd_ref[...], preferred_element_type=f32)           # (ROWS, L*D)

    feat_all = g[0:MP, :]                    # (MP, L*D)  row = p*M2 + m2, lane-dense over L
    node_mp = g[MP:2 * MP, :]                # (MP, L*D)  node emb replicated per lane-group
    node_sb = g[2 * MP:2 * MP + SB, 0:D]     # (SB, D)
    node_rep = node_mp[0:M2, :]              # (M2, L*D)

    # ---- path weights for ALL P paths with one MXU reduce, then running max over P --------
    prod_all = feat_all * node_mp                                         # (MP, L*D) VPU
    ones_ld = jnp.ones((LD, 1), f32)
    pw_all = jnp.dot(prod_all, ones_ld, preferred_element_type=f32)       # (MP, 1)

    best_pw = pw_all[0:M2, :]
    best_path = feat_all[0:M2, :]
    for p in range(1, P):
        pw_p = pw_all[p * M2:(p + 1) * M2, :]
        feat_p = feat_all[p * M2:(p + 1) * M2, :]
        take = pw_p > best_pw                  # strict '>' keeps the FIRST maximal path
        best_pw = jnp.where(take, pw_p, best_pw)
        best_path = jnp.where(take, feat_p, best_path)

    # ---- masked softmax over path positions (segment reduce as one selector matmul) -------
    prod = best_path * node_rep                                           # (M2, L*D)
    nw = jnp.dot(prod, seg_ref[...], preferred_element_type=f32)          # (M2, L)
    mask = (nw != 0).astype(f32)
    logits = nw + (mask - 1.0) * 9999.0
    mx = jnp.max(logits, axis=1, keepdims=True)
    e = jnp.exp(logits - mx)
    sm = e / jnp.sum(e, axis=1, keepdims=True)                            # (M2, L)

    # ---- distance-weighted path: EXPAND (v folded in) -> elementwise -> FOLD back to D ----
    attended = jnp.dot(sm, expand_ref[...], preferred_element_type=f32) * best_path  # (M2, L*D)
    dwp = jnp.dot(attended, fold_ref[...], preferred_element_type=f32)               # (M2, D)

    # ---- neighbour-weighted context reduction as one selector matmul -----------------------
    ctx = jnp.dot(sel_ref[...], dwp, preferred_element_type=f32)          # (SB, D)

    # ---- output Linear for BOTH siamese branches (concat folded into two matmuls) ----------
    out = (jnp.dot(node_sb, W_ref[0:D, :], preferred_element_type=f32)
           + jnp.dot(ctx, W_ref[D:2 * D, :], preferred_element_type=f32)
           + b_ref[...])                                                  # (SB, OUT_pad)

    # ---- cosine similarity (torch semantics) via rsqrt on the EUP ---------------------------
    o0 = out[0:B, :]
    o1 = out[B:2 * B, :]
    dotp = jnp.sum(o0 * o1, axis=1, keepdims=True)
    n0 = jnp.sum(o0 * o0, axis=1, keepdims=True)
    n1 = jnp.sum(o1 * o1, axis=1, keepdims=True)
    # dot / max(sqrt(n0*n1), eps) == dot * rsqrt(max(n0*n1, eps^2))
    out_ref[...] = dotp * jax.lax.rsqrt(jnp.maximum(n0 * n1, jnp.float32(1e-16)))


@jax.jit
def siamese_forward(nodes, features, emb, v, w3, W_out, b_out):
    """nodes:(B,2) int; features:(B,2,N,P,L) int; emb:(V,D);
       v:(L,); w3:(3,)=(w_rootpath, w_children, w_obj_neighbours);
       W_out:(2D,OUT) (torch Linear weight transposed); b_out:(OUT,)."""
    f32 = jnp.float32
    B, S = nodes.shape
    N, P, L = features.shape[2], features.shape[3], features.shape[4]
    V, D = emb.shape
    OUT = W_out.shape[1]
    assert S == 2 and N == 4, "reference module hard-codes 2 branches and 4 neighbour types"
    SB = S * B
    M2 = SB * N
    MP = M2 * P
    OUT_pad = ((OUT + 127) // 128) * 128
    V_pad = ((max(V, 64) + 63) // 64) * 64      # -> L*V_pad = 256 at these shapes
    LD = L * D

    # ---- tiny int32 index prep (all fused under jit, device-side) ---------------------------
    feats = features.astype(jnp.int32)
    nodes_i = nodes.astype(jnp.int32)
    offs = (jnp.arange(L, dtype=jnp.int32) * V_pad)[None, :]                    # (1, L)
    # feature row r = p*M2 + ((s*B+b)*N + n)
    feat_idx = jnp.transpose(feats, (3, 1, 0, 2, 4)).reshape(MP, L)             # vocab ids
    nodes_t = jnp.transpose(nodes_i, (1, 0))                                    # (S, B)
    node_m2 = jnp.broadcast_to(nodes_t[:, :, None], (S, B, N)).reshape(M2)
    node_mp = jnp.tile(node_m2, (P,))                                           # row = p*M2+m2
    node_sb = nodes_t.reshape(SB)
    cidx = jnp.concatenate([feat_idx + offs,
                            node_mp[:, None] + offs,
                            node_sb[:, None] + offs], axis=0)                   # (2*MP+SB, L)

    # ---- constant selector / weight matrices (device-side, fused under jit) ----------------
    emb_pad = jnp.zeros((V_pad, D), f32).at[:V, :].set(emb.astype(f32))
    eye_l = jnp.eye(L, dtype=f32)
    emb_bd = (eye_l[:, None, :, None] * emb_pad[None, :, None, :]).reshape(L * V_pad, LD)

    c_iota = jnp.arange(LD, dtype=jnp.int32)
    seg = (c_iota[:, None] // D == jnp.arange(L, dtype=jnp.int32)[None, :]).astype(f32)   # (LD, L)
    expand = seg.T * v.astype(f32)[:, None]                                               # (L, LD)
    fold = ((c_iota % D)[:, None] == jnp.arange(D, dtype=jnp.int32)[None, :]).astype(f32)  # (LD, D)

    w3f = w3.astype(f32)
    w_r, w_c, w_o = w3f[0], w3f[1], w3f[2]
    wvec = jnp.stack([w_r, w_c, w_o, 1.0 - w_r - w_c - w_o])                    # (N,)
    local = (jnp.arange(M2, dtype=jnp.int32)[None, :]
             - jnp.arange(SB, dtype=jnp.int32)[:, None] * N)
    sel = jnp.where((local >= 0) & (local < N),
                    wvec[jnp.clip(local, 0, N - 1)], 0.0).astype(f32)           # (SB, M2)

    W_pad = jnp.zeros((2 * D, OUT_pad), f32).at[:, :OUT].set(W_out.astype(f32))
    b_pad = jnp.zeros((1, OUT_pad), f32).at[:, :OUT].set(b_out.astype(f32)[None, :])

    vmem = pl.BlockSpec(memory_space=pltpu.MemorySpace.VMEM)
    kernel = functools.partial(_siamese_kernel, B, N, P, L, D)
    # Whole problem (<1 MiB) fits VMEM on v5e/v6e/v7x; no grid at these sizes (grid steps cost
    # ~0.35 us each and a megacore split at B=2 is pure overhead).
    # TODO(synk): if V / B / N ever scale up, keep emb in HBM (memory_space=pl.ANY) + manual
    # DMA and tile the batch with a grid (dimension_semantics=("parallel",)); budget tiles
    # against v7x's 64 MiB physical / 32 MiB default scoped VMEM (half of v5e/v6e).
    sim = pl.pallas_call(
        kernel,
        out_shape=jax.ShapeDtypeStruct((B, 1), jnp.float32),
        in_specs=[vmem] * 8,
        out_specs=vmem,
    )(cidx, emb_bd, seg, expand, fold, sel, W_pad, b_pad)
    return sim[:, 0]


def _reference(nodes, features, emb, v, w3, W_out, b_out):
    """Pure-JAX float32 reference mirroring the PyTorch forward."""
    f32 = jnp.float32
    emb = emb.astype(f32)
    v = v.astype(f32)
    w_r, w_c, w_o = w3.astype(f32)[0], w3.astype(f32)[1], w3.astype(f32)[2]
    w_d = 1.0 - w_r - w_c - w_o
    nodes_t = jnp.transpose(nodes, (1, 0))
    feats_t = jnp.transpose(features, (1, 0, 2, 3, 4))
    results = []
    for i in range(2):
        node_emb = emb[nodes_t[i]]                                     # (B, D)
        feat_emb = emb[feats_t[i]]                                     # (B, N, P, L, D)
        pw = jnp.einsum('bd,bnpld->bnpl', node_emb, feat_emb).sum(-1)  # (B, N, P)
        best = jnp.argmax(pw, axis=-1)                                 # first max
        best_path = jnp.take_along_axis(
            feat_emb, best[:, :, None, None, None], axis=2)[:, :, 0]   # (B, N, L, D)
        nw = jnp.einsum('bd,bnld->bnl', node_emb, best_path)
        logits = nw + ((nw != 0).astype(f32) - 1.0) * 9999.0
        sm = jax.nn.softmax(logits, axis=-1)
        dwp = jnp.sum(v[None, None, :, None] * sm[..., None] * best_path, axis=2)
        ctx = w_r * dwp[:, 0] + w_c * dwp[:, 1] + w_o * dwp[:, 2] + w_d * dwp[:, 3]
        cat = jnp.concatenate([node_emb, ctx], axis=1)
        results.append(cat @ W_out.astype(f32) + b_out.astype(f32))
    a, b = results
    dot = jnp.sum(a * b, axis=1)
    denom = jnp.sqrt(jnp.sum(a * a, axis=1)) * jnp.sqrt(jnp.sum(b * b, axis=1))
    return dot / jnp.maximum(denom, 1e-8)


if __name__ == "__main__":
    key = jax.random.PRNGKey(0)
    B, N, P, L, D, V, OUT = 2, 4, 3, 4, 32, 50, 300

    k1, k2, k3, k4, k5 = jax.random.split(key, 5)
    emb = jax.random.normal(k1, (V, D), jnp.float32)
    emb = emb.at[0].set(0.0)                          # padding index -> zero emb (exercises mask)
    nodes = jax.random.randint(k2, (B, 2), 1, V, dtype=jnp.int32)
    features = jax.random.randint(k3, (B, 2, N, P, L), 0, V, dtype=jnp.int32)
    W_out = jax.random.normal(k4, (2 * D, OUT), jnp.float32) * 0.05
    b_out = jax.random.normal(k5, (OUT,), jnp.float32) * 0.05
    v = jnp.full((L,), 1.0 / L, jnp.float32)          # self.v init
    w3 = jnp.array([0.25, 0.25, 0.25], jnp.float32)   # w_rootpath, w_children, w_obj_neighbours

    sim = jax.block_until_ready(siamese_forward(nodes, features, emb, v, w3, W_out, b_out))
    ref = jax.block_until_ready(_reference(nodes, features, emb, v, w3, W_out, b_out))

    assert sim.shape == (B,)
    assert bool(jnp.all(jnp.isfinite(sim)))
    assert bool(jnp.all(jnp.abs(sim) <= 1.0 + 1e-5))
    assert bool(jnp.all(jnp.abs(sim - ref) < 2e-3)), (sim, ref)
    print("KERNEL_OK")
</pallas_src>

<mosaic_0001>
module attributes {stable_mosaic.version = 11 : i64} {
  func.func @_siamese_kernel(%arg0: memref<100x4xi32, #tpu.memory_space<vmem>>, %arg1: memref<256x128xf32, #tpu.memory_space<vmem>>, %arg2: memref<128x4xf32, #tpu.memory_space<vmem>>, %arg3: memref<4x128xf32, #tpu.memory_space<vmem>>, %arg4: memref<128x32xf32, #tpu.memory_space<vmem>>, %arg5: memref<4x16xf32, #tpu.memory_space<vmem>>, %arg6: memref<64x384xf32, #tpu.memory_space<vmem>>, %arg7: memref<1x384xf32, #tpu.memory_space<vmem>>, %arg8: memref<2x1xf32, #tpu.memory_space<vmem>>) attributes {dimension_semantics = [], scalar_prefetch = 0 : i64, scratch_operands = 0 : i64, tpu.core_type = #tpu.core_type<tc>} {
    %c0 = arith.constant 0 : index
    %c0_0 = arith.constant 0 : index
    %0 = vector.load %arg0[%c0, %c0_0] : memref<100x4xi32, #tpu.memory_space<vmem>>, vector<100x4xi32>
    %1 = tpu.iota {dimensions = array<i32: 1>} : vector<100x256xi32>
    %cst = arith.constant 0.000000e+00 : f32
    %2 = vector.broadcast %cst : f32 to vector<100x256xf32>
    %3 = vector.extract_strided_slice %0 {offsets = [0, 0], sizes = [100, 1], strides = [1, 1]} : vector<100x4xi32> to vector<100x1xi32>
    %4 = vector.broadcast %3 : vector<100x1xi32> to vector<100x256xi32>
    %5 = arith.cmpi eq, %4, %1 : vector<100x256xi32>
    %6 = arith.extui %5 : vector<100x256xi1> to vector<100x256xi32>
    %7 = arith.sitofp %6 : vector<100x256xi32> to vector<100x256xf32>
    %8 = arith.addf %2, %7 : vector<100x256xf32>
    %9 = vector.extract_strided_slice %0 {offsets = [0, 1], sizes = [100, 1], strides = [1, 1]} : vector<100x4xi32> to vector<100x1xi32>
    %10 = vector.broadcast %9 : vector<100x1xi32> to vector<100x256xi32>
    %11 = arith.cmpi eq, %10, %1 : vector<100x256xi32>
    %12 = arith.extui %11 : vector<100x256xi1> to vector<100x256xi32>
    %13 = arith.sitofp %12 : vector<100x256xi32> to vector<100x256xf32>
    %14 = arith.addf %8, %13 : vector<100x256xf32>
    %15 = vector.extract_strided_slice %0 {offsets = [0, 2], sizes = [100, 1], strides = [1, 1]} : vector<100x4xi32> to vector<100x1xi32>
    %16 = vector.broadcast %15 : vector<100x1xi32> to vector<100x256xi32>
    %17 = arith.cmpi eq, %16, %1 : vector<100x256xi32>
    %18 = arith.extui %17 : vector<100x256xi1> to vector<100x256xi32>
    %19 = arith.sitofp %18 : vector<100x256xi32> to vector<100x256xf32>
    %20 = arith.addf %14, %19 : vector<100x256xf32>
    %21 = vector.extract_strided_slice %0 {offsets = [0, 3], sizes = [100, 1], strides = [1, 1]} : vector<100x4xi32> to vector<100x1xi32>
    %22 = vector.broadcast %21 : vector<100x1xi32> to vector<100x256xi32>
    %23 = arith.cmpi eq, %22, %1 : vector<100x256xi32>
    %24 = arith.extui %23 : vector<100x256xi1> to vector<100x256xi32>
    %25 = arith.sitofp %24 : vector<100x256xi32> to vector<100x256xf32>
    %26 = arith.addf %20, %25 : vector<100x256xf32>
    %c0_1 = arith.constant 0 : index
    %c0_2 = arith.constant 0 : index
    %27 = vector.load %arg1[%c0_1, %c0_2] : memref<256x128xf32, #tpu.memory_space<vmem>>, vector<256x128xf32>
    %cst_3 = arith.constant dense<0.000000e+00> : vector<100x128xf32>
    %28 = tpu.matmul %26, %27, %cst_3 {dimension_numbers = #tpu.dot_dimension_numbers<[1], [0], [0], [1], [0, 0, 1, 1], [], []>} : vector<100x256xf32>, vector<256x128xf32>, vector<100x128xf32> -> vector<100x128xf32>
    %29 = vector.extract_strided_slice %28 {offsets = [0, 0], sizes = [48, 128], strides = [1, 1]} : vector<100x128xf32> to vector<48x128xf32>
    %30 = vector.extract_strided_slice %28 {offsets = [48, 0], sizes = [48, 128], strides = [1, 1]} : vector<100x128xf32> to vector<48x128xf32>
    %31 = vector.extract_strided_slice %28 {offsets = [96, 0], sizes = [4, 32], strides = [1, 1]} : vector<100x128xf32> to vector<4x32xf32>
    %32 = vector.extract_strided_slice %30 {offsets = [0, 0], sizes = [16, 128], strides = [1, 1]} : vector<48x128xf32> to vector<16x128xf32>
    %33 = arith.mulf %29, %30 : vector<48x128xf32>
    %cst_4 = arith.constant 1.000000e+00 : f32
    %34 = vector.broadcast %cst_4 : f32 to vector<128x1xf32>
    %cst_5 = arith.constant dense<0.000000e+00> : vector<48x1xf32>
    %35 = tpu.matmul %33, %34, %cst_5 {dimension_numbers = #tpu.dot_dimension_numbers<[1], [0], [0], [1], [0, 0, 1, 1], [], []>} : vector<48x128xf32>, vector<128x1xf32>, vector<48x1xf32> -> vector<48x1xf32>
    %36 = vector.extract_strided_slice %35 {offsets = [0, 0], sizes = [16, 1], strides = [1, 1]} : vector<48x1xf32> to vector<16x1xf32>
    %37 = vector.extract_strided_slice %29 {offsets = [0, 0], sizes = [16, 128], strides = [1, 1]} : vector<48x128xf32> to vector<16x128xf32>
    %38 = vector.extract_strided_slice %35 {offsets = [16, 0], sizes = [16, 1], strides = [1, 1]} : vector<48x1xf32> to vector<16x1xf32>
    %39 = vector.extract_strided_slice %29 {offsets = [16, 0], sizes = [16, 128], strides = [1, 1]} : vector<48x128xf32> to vector<16x128xf32>
    %40 = arith.cmpf ogt, %38, %36 : vector<16x1xf32>
    %41 = arith.select %40, %38, %36 : vector<16x1xi1>, vector<16x1xf32>
    %42 = vector.shape_cast %40 : vector<16x1xi1> to vector<16x1xi1>
    %43 = vector.broadcast %42 : vector<16x1xi1> to vector<16x128xi1>
    %44 = arith.select %43, %39, %37 : vector<16x128xi1>, vector<16x128xf32>
    %45 = vector.extract_strided_slice %35 {offsets = [32, 0], sizes = [16, 1], strides = [1, 1]} : vector<48x1xf32> to vector<16x1xf32>
    %46 = vector.extract_strided_slice %29 {offsets = [32, 0], sizes = [16, 128], strides = [1, 1]} : vector<48x128xf32> to vector<16x128xf32>
    %47 = arith.cmpf ogt, %45, %41 : vector<16x1xf32>
    %48 = vector.shape_cast %47 : vector<16x1xi1> to vector<16x1xi1>
    %49 = vector.broadcast %48 : vector<16x1xi1> to vector<16x128xi1>
    %50 = arith.select %49, %46, %44 : vector<16x128xi1>, vector<16x128xf32>
    %51 = arith.mulf %50, %32 : vector<16x128xf32>
    %c0_6 = arith.constant 0 : index
    %c0_7 = arith.constant 0 : index
    %52 = vector.load %arg2[%c0_6, %c0_7] : memref<128x4xf32, #tpu.memory_space<vmem>>, vector<128x4xf32>
    %cst_8 = arith.constant dense<0.000000e+00> : vector<16x4xf32>
    %53 = tpu.matmul %51, %52, %cst_8 {dimension_numbers = #tpu.dot_dimension_numbers<[1], [0], [0], [1], [0, 0, 1, 1], [], []>} : vector<16x128xf32>, vector<128x4xf32>, vector<16x4xf32> -> vector<16x4xf32>
    %cst_9 = arith.constant 0.000000e+00 : f32
    %54 = vector.broadcast %cst_9 : f32 to vector<16x4xf32>
    %55 = arith.cmpf one, %53, %54 : vector<16x4xf32>
    %56 = arith.extui %55 : vector<16x4xi1> to vector<16x4xi32>
    %57 = arith.sitofp %56 : vector<16x4xi32> to vector<16x4xf32>
    %cst_10 = arith.constant 1.000000e+00 : f32
    %58 = vector.broadcast %cst_10 : f32 to vector<16x4xf32>
    %59 = arith.subf %57, %58 : vector<16x4xf32>
    %cst_11 = arith.constant 9.999000e+03 : f32
    %60 = vector.broadcast %cst_11 : f32 to vector<16x4xf32>
    %61 = arith.mulf %59, %60 : vector<16x4xf32>
    %62 = arith.addf %53, %61 : vector<16x4xf32>
    %cst_12 = arith.constant dense<0xFF800000> : vector<16xf32>
    %63 = vector.multi_reduction <maximumf>, %62, %cst_12 [1] : vector<16x4xf32> to vector<16xf32>
    %64 = vector.shape_cast %63 : vector<16xf32> to vector<16x1xf32>
    %65 = vector.broadcast %64 : vector<16x1xf32> to vector<16x4xf32>
    %66 = arith.subf %62, %65 : vector<16x4xf32>
    %67 = math.exp %66 : vector<16x4xf32>
    %cst_13 = arith.constant dense<0.000000e+00> : vector<16xf32>
    %68 = vector.multi_reduction <add>, %67, %cst_13 [1] : vector<16x4xf32> to vector<16xf32>
    %69 = vector.shape_cast %68 : vector<16xf32> to vector<16x1xf32>
    %70 = vector.broadcast %69 : vector<16x1xf32> to vector<16x4xf32>
    %71 = arith.divf %67, %70 : vector<16x4xf32>
    %c0_14 = arith.constant 0 : index
    %c0_15 = arith.constant 0 : index
    %72 = vector.load %arg3[%c0_14, %c0_15] : memref<4x128xf32, #tpu.memory_space<vmem>>, vector<4x128xf32>
    %cst_16 = arith.constant dense<0.000000e+00> : vector<16x128xf32>
    %73 = tpu.matmul %71, %72, %cst_16 {dimension_numbers = #tpu.dot_dimension_numbers<[1], [0], [0], [1], [0, 0, 1, 1], [], []>} : vector<16x4xf32>, vector<4x128xf32>, vector<16x128xf32> -> vector<16x128xf32>
    %74 = arith.mulf %73, %50 : vector<16x128xf32>
    %c0_17 = arith.constant 0 : index
    %c0_18 = arith.constant 0 : index
    %75 = vector.load %arg4[%c0_17, %c0_18] : memref<128x32xf32, #tpu.memory_space<vmem>>, vector<128x32xf32>
    %cst_19 = arith.constant dense<0.000000e+00> : vector<16x32xf32>
    %76 = tpu.matmul %74, %75, %cst_19 {dimension_numbers = #tpu.dot_dimension_numbers<[1], [0], [0], [1], [0, 0, 1, 1], [], []>} : vector<16x128xf32>, vector<128x32xf32>, vector<16x32xf32> -> vector<16x32xf32>
    %c0_20 = arith.constant 0 : index
    %c0_21 = arith.constant 0 : index
    %77 = vector.load %arg5[%c0_20, %c0_21] : memref<4x16xf32, #tpu.memory_space<vmem>>, vector<4x16xf32>
    %cst_22 = arith.constant dense<0.000000e+00> : vector<4x32xf32>
    %78 = tpu.matmul %77, %76, %cst_22 {dimension_numbers = #tpu.dot_dimension_numbers<[1], [0], [0], [1], [0, 0, 1, 1], [], []>} : vector<4x16xf32>, vector<16x32xf32>, vector<4x32xf32> -> vector<4x32xf32>
    %c0_23 = arith.constant 0 : index
    %c0_24 = arith.constant 0 : index
    %79 = vector.load %arg6[%c0_23, %c0_24] : memref<64x384xf32, #tpu.memory_space<vmem>>, vector<32x384xf32>
    %cst_25 = arith.constant dense<0.000000e+00> : vector<4x384xf32>
    %80 = tpu.matmul %31, %79, %cst_25 {dimension_numbers = #tpu.dot_dimension_numbers<[1], [0], [0], [1], [0, 0, 1, 1], [], []>} : vector<4x32xf32>, vector<32x384xf32>, vector<4x384xf32> -> vector<4x384xf32>
    %c32 = arith.constant 32 : index
    %c0_26 = arith.constant 0 : index
    %81 = vector.load %arg6[%c32, %c0_26] : memref<64x384xf32, #tpu.memory_space<vmem>>, vector<32x384xf32>
    %cst_27 = arith.constant dense<0.000000e+00> : vector<4x384xf32>
    %82 = tpu.matmul %78, %81, %cst_27 {dimension_numbers = #tpu.dot_dimension_numbers<[1], [0], [0], [1], [0, 0, 1, 1], [], []>} : vector<4x32xf32>, vector<32x384xf32>, vector<4x384xf32> -> vector<4x384xf32>
    %83 = arith.addf %80, %82 : vector<4x384xf32>
    %c0_28 = arith.constant 0 : index
    %c0_29 = arith.constant 0 : index
    %84 = vector.load %arg7[%c0_28, %c0_29] : memref<1x384xf32, #tpu.memory_space<vmem>>, vector<1x384xf32>
    %85 = vector.broadcast %84 : vector<1x384xf32> to vector<4x384xf32>
    %86 = arith.addf %83, %85 : vector<4x384xf32>
    %87 = vector.extract_strided_slice %86 {offsets = [0, 0], sizes = [2, 384], strides = [1, 1]} : vector<4x384xf32> to vector<2x384xf32>
    %88 = vector.extract_strided_slice %86 {offsets = [2, 0], sizes = [2, 384], strides = [1, 1]} : vector<4x384xf32> to vector<2x384xf32>
    %89 = arith.mulf %87, %88 : vector<2x384xf32>
    %cst_30 = arith.constant dense<0.000000e+00> : vector<2xf32>
    %90 = vector.multi_reduction <add>, %89, %cst_30 [1] : vector<2x384xf32> to vector<2xf32>
    %91 = vector.shape_cast %90 : vector<2xf32> to vector<2x1xf32>
    %92 = arith.mulf %87, %87 : vector<2x384xf32>
    %cst_31 = arith.constant dense<0.000000e+00> : vector<2xf32>
    %93 = vector.multi_reduction <add>, %92, %cst_31 [1] : vector<2x384xf32> to vector<2xf32>
    %94 = vector.shape_cast %93 : vector<2xf32> to vector<2x1xf32>
    %95 = arith.mulf %88, %88 : vector<2x384xf32>
    %cst_32 = arith.constant dense<0.000000e+00> : vector<2xf32>
    %96 = vector.multi_reduction <add>, %95, %cst_32 [1] : vector<2x384xf32> to vector<2xf32>
    %97 = vector.shape_cast %96 : vector<2xf32> to vector<2x1xf32>
    %98 = arith.mulf %94, %97 : vector<2x1xf32>
    %cst_33 = arith.constant 1.000000e-16 : f32
    %99 = vector.broadcast %cst_33 : f32 to vector<2x1xf32>
    %100 = arith.maximumf %98, %99 : vector<2x1xf32>
    %101 = math.rsqrt %100 : vector<2x1xf32>
    %102 = arith.mulf %91, %101 : vector<2x1xf32>
    %c0_34 = arith.constant 0 : index
    %c0_35 = arith.constant 0 : index
    %103 = vector.load %arg8[%c0_34, %c0_35] : memref<2x1xf32, #tpu.memory_space<vmem>>, vector<2x1xf32>
    tpu.vector_store %arg8[%c0_34, %c0_35], %102 {strides = array<i32>} : memref<2x1xf32, #tpu.memory_space<vmem>>, vector<2x1xf32>,
    return
  }
}

</mosaic_0001>

<llo_original>
// kernel: tile.5
$region0: #{tile.5}
  %s0 = inlined_call_operand.vmem [shape: s32[2,2,4], index: 0, kind: input, shape index: {}]
  %s1 = inlined_call_operand.vmem [shape: s32[16], index: 1, kind: output, shape index: {}]
  $region1: #{tile.5} parent=0
    #allocation0 [shape = 'u8[4096]{0}', space=vmem, size = 0x1000, scoped, tag = 'scoped mem for output reshape']
    #allocation1 [shape = 'u8[8192]{0}', space=vmem, size = 0x2000, scoped, tag = 'scoped mem for input reshape']
    %s3 = sshllo.u32 0, 2
    %s4 = scalar_lea.vmem %s0, 2
    %v5 = vld [vmem:[%s4] sm:%s3]
    %s6 = scalar_lea.vmem [#allocation1], 8
    %7 = vst [vmem:[%s6] sm:%s3] %v5
    %v8 = vld [vmem:[%s0] sm:%s3]
    %9 = vst [vmem:[#allocation1] sm:%s3] %v8
    %v10 = vld [vmem:[#allocation1] sm:$0x1]
    %vm11 = vcmask 31744
    %12 = vst.msk [vmem:[#allocation0] sm:$0x1] %vm11, %v10
    %s13 = scalar_lea.vmem [#allocation1], 9
    %v14 = vld [vmem:[%s13] sm:$0x1]
    %15 = vrot.lane.b32.xlu0 %v14, 12
    %v16 = vpop.permute.xlu0 %15
    %vm17 = vcmask 130144
    %18 = vst.msk [vmem:[#allocation0] sm:$0x1] %vm17, %v16
    %s19 = scalar_lea.vmem [#allocation1], 8
    %v20 = vld [vmem:[%s19] sm:$0x1]
    %21 = vrot.lane.b32.xlu0 %v20, 8
    %v22 = vpop.permute.xlu0 %21
    %vm23 = vcmask 97344
    %24 = vst.msk [vmem:[#allocation0] sm:$0x1] %vm23, %v22
    %s25 = scalar_lea.vmem [#allocation1], 1
    %v26 = vld [vmem:[%s25] sm:$0x1]
    %27 = vrot.lane.b32.xlu0 %v26, 4
    %v28 = vpop.permute.xlu0 %27
    %vm29 = vcmask 64544
    %30 = vst.msk [vmem:[#allocation0] sm:$0x1] %vm29, %v28
    %s32 = sshllo.u32 0, 1
    %v34 = vld [vmem:[#allocation0] sm:%s32]
    %s35 = sshllo.u32 0, 1
    %36 = vst [vmem:[%s1] sm:%s35] %v34

// kernel: tile.6
$region0: #{tile.6}
  #allocation0 [shape = 's32[1]{0}', space=sflag, size = 0x4, scoped, tag = 'scoped memory for tile.6']
  %s0 = inlined_call_operand.vmem [shape: s32[16], index: 0, kind: input, shape index: {}]
  %s1 = inlined_call_operand.vmem [shape: s32[3,16], index: 1, kind: output, shape index: {}]
  // Predicated region
  $region2: #{tile.6} parent=0 // pred_check
    _
  $region3: #{tile.6} parent=0 // pred_check_branch
    %3 = sbr.rel (0) target = $region5
  $region4: #{tile.6} parent=0 // pred_region
    _
  $region5: #{tile.6} parent=0 // pred_fallthru
    _
  %v4 = vld [vmem:[%s0] ss:$0 sm:$0xff]
  %5 = vst [vmem:[%s1] sm:$0xf] %v4

// kernel: siamese_forward.1
$region0: #{siamese_forward.1}
  #allocation0 [shape = 'u32[]', space=smem, size = 0x4, offset = 0x4, fixed_abs, tag = 'smem constant byte address 0x4 - core index']
  #allocation1 [shape = 'u32[144,128]{1,0:T(1,128)}', space=vmem, size = 0x12000, scoped, tag = 'internal scratch']
  %s0 = inlined_call_operand.vmem [shape: s32[100,4], index: 0, kind: input, shape index: {}]
  %s1 = inlined_call_operand.vmem [shape: f32[256,128], index: 1, kind: input, shape index: {}]
  %s2 = inlined_call_operand.vmem [shape: f32[128,4], index: 2, kind: input, shape index: {}]
  %s3 = inlined_call_operand.vmem [shape: f32[4,128], index: 3, kind: input, shape index: {}]
  %s4 = inlined_call_operand.vmem [shape: f32[128,32], index: 4, kind: input, shape index: {}]
  %s5 = inlined_call_operand.vmem [shape: f32[4,16], index: 5, kind: input, shape index: {}]
  %s6 = inlined_call_operand.vmem [shape: f32[64,384], index: 6, kind: input, shape index: {}]
  %s7 = inlined_call_operand.vmem [shape: f32[1,384], index: 7, kind: input, shape index: {}]
  %s8 = inlined_call_operand.vmem [shape: f32[2,1], index: 8, kind: output, shape index: {}]
  %s9 = sld [smem:[#allocation0]]
  $region42: #{siamese_forward.1} parent=0
    _
  %s11 = ssub.s32 1, %s9
  %s12 = scalar_select 0, %s11, %s9
  // Predicated region
  $region2: #{siamese_forward.1} parent=0 // pred_check
    _
  $region3: #{siamese_forward.1} parent=0 // pred_check_branch
    %14 = sbr.rel (0) target = $region5
  $region4: #{siamese_forward.1} parent=0 // pred_region
    _
  $region5: #{siamese_forward.1} parent=0 // pred_fallthru
    _
  // Predicated region
  $region6: #{siamese_forward.1} parent=0 // pred_check
    _
  $region7: #{siamese_forward.1} parent=0 // pred_check_branch
    %16 = sbr.rel (0) target = $region9
  $region8: #{siamese_forward.1} parent=0 // pred_region
    _
  $region9: #{siamese_forward.1} parent=0 // pred_fallthru
    _
  // Predicated region
  $region10: #{siamese_forward.1} parent=0 // pred_check
    _
  $region11: #{siamese_forward.1} parent=0 // pred_check_branch
    %18 = sbr.rel (0) target = $region13
  $region12: #{siamese_forward.1} parent=0 // pred_region
    _
  $region13: #{siamese_forward.1} parent=0 // pred_fallthru
    _
  // Predicated region
  $region14: #{siamese_forward.1} parent=0 // pred_check
    _
  $region15: #{siamese_forward.1} parent=0 // pred_check_branch
    %20 = sbr.rel (0) target = $region17
  $region16: #{siamese_forward.1} parent=0 // pred_region
    _
  $region17: #{siamese_forward.1} parent=0 // pred_fallthru
    _
  // Predicated region
  $region18: #{siamese_forward.1} parent=0 // pred_check
    _
  $region19: #{siamese_forward.1} parent=0 // pred_check_branch
    %22 = sbr.rel (0) target = $region21
  $region20: #{siamese_forward.1} parent=0 // pred_region
    _
  $region21: #{siamese_forward.1} parent=0 // pred_fallthru
    _
  // Predicated region
  $region22: #{siamese_forward.1} parent=0 // pred_check
    _
  $region23: #{siamese_forward.1} parent=0 // pred_check_branch
    %24 = sbr.rel (0) target = $region25
  $region24: #{siamese_forward.1} parent=0 // pred_region
    _
  $region25: #{siamese_forward.1} parent=0 // pred_fallthru
    _
  // Predicated region
  $region26: #{siamese_forward.1} parent=0 // pred_check
    _
  $region27: #{siamese_forward.1} parent=0 // pred_check_branch
    %26 = sbr.rel (0) target = $region29
  $region28: #{siamese_forward.1} parent=0 // pred_region
    _
  $region29: #{siamese_forward.1} parent=0 // pred_fallthru
    _
  // Predicated region
  $region30: #{siamese_forward.1} parent=0 // pred_check
    _
  $region31: #{siamese_forward.1} parent=0 // pred_check_branch
    %28 = sbr.rel (0) target = $region33
  $region32: #{siamese_forward.1} parent=0 // pred_region
    _
  $region33: #{siamese_forward.1} parent=0 // pred_fallthru
    _
  %v29 = vld [vmem:[%s0] sm:$0xff]
  %v30 = vld [vmem:[%s0 + $0x8] sm:$0xff]
  %v31 = vld [vmem:[%s0 + $0x10] sm:$0xff]
  %v32 = vld [vmem:[%s0 + $0x18] sm:$0xff]
  %v33 = vld [vmem:[%s0 + $0x20] sm:$0xff]
  %v34 = vld [vmem:[%s0 + $0x28] sm:$0xff]
  %v35 = vld [vmem:[%s0 + $0x30] sm:$0xff]
  %v36 = vld [vmem:[%s0 + $0x38] sm:$0xff]
  %v37 = vld [vmem:[%s0 + $0x40] sm:$0xff]
  %v38 = vld [vmem:[%s0 + $0x48] sm:$0xff]
  %v39 = vld [vmem:[%s0 + $0x50] sm:$0xff]
  %v40 = vld [vmem:[%s0 + $0x58] sm:$0xff]
  %v41 = vld [vmem:[%s0 + $0x60] sm:$0xf]
  %v42 = vlaneseq
  %v43 = vand.u32 %v42, 127
  %v44 = vadd.s32 %v43, 128
  %45 = vset.pattern.permute.xlu0 0
  %46 = vperm.xlu0 %45, %v29
  %v47 = vpop.permute.xlu0 %46
  %48 = vset.pattern.permute.xlu0 0
  %49 = vperm.xlu0 %48, %v30
  %v50 = vpop.permute.xlu0 %49
  %51 = vset.pattern.permute.xlu0 0
  %52 = vperm.xlu0 %51, %v31
  %v53 = vpop.permute.xlu0 %52
  %54 = vset.pattern.permute.xlu0 0
  %55 = vperm.xlu0 %54, %v32
  %v56 = vpop.permute.xlu0 %55
  %57 = vset.pattern.permute.xlu0 0
  %58 = vperm.xlu0 %57, %v33
  %v59 = vpop.permute.xlu0 %58
  %60 = vset.pattern.permute.xlu0 0
  %61 = vperm.xlu0 %60, %v34
  %v62 = vpop.permute.xlu0 %61
  %63 = vset.pattern.permute.xlu0 0
  %64 = vperm.xlu0 %63, %v35
  %v65 = vpop.permute.xlu0 %64
  %66 = vset.pattern.permute.xlu0 0
  %67 = vperm.xlu0 %66, %v36
  %v68 = vpop.permute.xlu0 %67
  %69 = vset.pattern.permute.xlu0 0
  %70 = vperm.xlu0 %69, %v37
  %v71 = vpop.permute.xlu0 %70
  %72 = vset.pattern.permute.xlu0 0
  %73 = vperm.xlu0 %72, %v38
  %v74 = vpop.permute.xlu0 %73
  %75 = vset.pattern.permute.xlu0 0
  %76 = vperm.xlu0 %75, %v39
  %v77 = vpop.permute.xlu0 %76
  %78 = vset.pattern.permute.xlu0 0
  %79 = vperm.xlu0 %78, %v40
  %v80 = vpop.permute.xlu0 %79
  %81 = vset.pattern.permute.xlu0 0
  %82 = vperm.xlu0 %81, %v41
  %v83 = vpop.permute.xlu0 %82
  %vm84 = vcmp.eq.s32.totalorder %v47, %v43
  %vm85 = vcmp.eq.s32.totalorder %v47, %v44
  %vm86 = vcmp.eq.s32.totalorder %v50, %v43
  %vm87 = vcmp.eq.s32.totalorder %v50, %v44
  %vm88 = vcmp.eq.s32.totalorder %v53, %v43
  %vm89 = vcmp.eq.s32.totalorder %v53, %v44
  %vm90 = vcmp.eq.s32.totalorder %v56, %v43
  %vm91 = vcmp.eq.s32.totalorder %v56, %v44
  %vm92 = vcmp.eq.s32.totalorder %v59, %v43
  %vm93 = vcmp.eq.s32.totalorder %v59, %v44
  %vm94 = vcmp.eq.s32.totalorder %v62, %v43
  %vm95 = vcmp.eq.s32.totalorder %v62, %v44
  %vm96 = vcmp.eq.s32.totalorder %v65, %v43
  %vm97 = vcmp.eq.s32.totalorder %v65, %v44
  %vm98 = vcmp.eq.s32.totalorder %v68, %v43
  %vm99 = vcmp.eq.s32.totalorder %v68, %v44
  %vm100 = vcmp.eq.s32.totalorder %v71, %v43
  %vm101 = vcmp.eq.s32.totalorder %v71, %v44
  %vm102 = vcmp.eq.s32.totalorder %v74, %v43
  %vm103 = vcmp.eq.s32.totalorder %v74, %v44
  %vm104 = vcmp.eq.s32.totalorder %v77, %v43
  %vm105 = vcmp.eq.s32.totalorder %v77, %v44
  %vm106 = vcmp.eq.s32.totalorder %v80, %v43
  %vm107 = vcmp.eq.s32.totalorder %v80, %v44
  %vm108 = vcmp.eq.s32.totalorder %v83, %v43
  %vm109 = vcmp.eq.s32.totalorder %v83, %v44
  %v110 = vsel %vm84, 1, 0
  %v111 = vsel %vm85, 1, 0
  %v112 = vsel %vm86, 1, 0
  %v113 = vsel %vm87, 1, 0
  %v114 = vsel %vm88, 1, 0
  %v115 = vsel %vm89, 1, 0
  %v116 = vsel %vm90, 1, 0
  %v117 = vsel %vm91, 1, 0
  %v118 = vsel %vm92, 1, 0
  %v119 = vsel %vm93, 1, 0
  %v120 = vsel %vm94, 1, 0
  %v121 = vsel %vm95, 1, 0
  %v122 = vsel %vm96, 1, 0
  %v123 = vsel %vm97, 1, 0
  %v124 = vsel %vm98, 1, 0
  %v125 = vsel %vm99, 1, 0
  %v126 = vsel %vm100, 1, 0
  %v127 = vsel %vm101, 1, 0
  %v128 = vsel %vm102, 1, 0
  %v129 = vsel %vm103, 1, 0
  %v130 = vsel %vm104, 1, 0
  %v131 = vsel %vm105, 1, 0
  %v132 = vsel %vm106, 1, 0
  %v133 = vsel %vm107, 1, 0
  %v134 = vsel %vm108, 1, 0
  %v135 = vsel %vm109, 1, 0
  %v136 = vcvt.s32.f32 %v110
  %v137 = vcvt.s32.f32 %v111
  %v138 = vcvt.s32.f32 %v112
  %v139 = vcvt.s32.f32 %v113
  %v140 = vcvt.s32.f32 %v114
  %v141 = vcvt.s32.f32 %v115
  %v142 = vcvt.s32.f32 %v116
  %v143 = vcvt.s32.f32 %v117
  %v144 = vcvt.s32.f32 %v118
  %v145 = vcvt.s32.f32 %v119
  %v146 = vcvt.s32.f32 %v120
  %v147 = vcvt.s32.f32 %v121
  %v148 = vcvt.s32.f32 %v122
  %v149 = vcvt.s32.f32 %v123
  %v150 = vcvt.s32.f32 %v124
  %v151 = vcvt.s32.f32 %v125
  %v152 = vcvt.s32.f32 %v126
  %v153 = vcvt.s32.f32 %v127
  %v154 = vcvt.s32.f32 %v128
  %v155 = vcvt.s32.f32 %v129
  %v156 = vcvt.s32.f32 %v130
  %v157 = vcvt.s32.f32 %v131
  %v158 = vcvt.s32.f32 %v132
  %v159 = vcvt.s32.f32 %v133
  %v160 = vcvt.s32.f32 %v134
  %v161 = vcvt.s32.f32 %v135
  %v162 = vadd.f32 %v136, 0.0
  %v163 = vadd.f32 %v137, 0.0
  %v164 = vadd.f32 %v138, 0.0
  %v165 = vadd.f32 %v139, 0.0
  %v166 = vadd.f32 %v140, 0.0
  %v167 = vadd.f32 %v141, 0.0
  %v168 = vadd.f32 %v142, 0.0
  %v169 = vadd.f32 %v143, 0.0
  %v170 = vadd.f32 %v144, 0.0
  %v171 = vadd.f32 %v145, 0.0
  %v172 = vadd.f32 %v146, 0.0
  %v173 = vadd.f32 %v147, 0.0
  %v174 = vadd.f32 %v148, 0.0
  %v175 = vadd.f32 %v149, 0.0
  %v176 = vadd.f32 %v150, 0.0
  %v177 = vadd.f32 %v151, 0.0
  %v178 = vadd.f32 %v152, 0.0
  %v179 = vadd.f32 %v153, 0.0
  %v180 = vadd.f32 %v154, 0.0
  %v181 = vadd.f32 %v155, 0.0
  %v182 = vadd.f32 %v156, 0.0
  %v183 = vadd.f32 %v157, 0.0
  %v184 = vadd.f32 %v158, 0.0
  %v185 = vadd.f32 %v159, 0.0
  %v186 = vadd.f32 %v160, 0.0
  %v187 = vadd.f32 %v161, 0.0
  %188 = vset.pattern.permute.xlu0 1
  %189 = vperm.xlu0 %188, %v29
  %v190 = vpop.permute.xlu0 %189
  %191 = vset.pattern.permute.xlu0 1
  %192 = vperm.xlu0 %191, %v30
  %v193 = vpop.permute.xlu0 %192
  %194 = vset.pattern.permute.xlu0 1
  %195 = vperm.xlu0 %194, %v31
  %v196 = vpop.permute.xlu0 %195
  %197 = vset.pattern.permute.xlu0 1
  %198 = vperm.xlu0 %197, %v32
  %v199 = vpop.permute.xlu0 %198
  %200 = vset.pattern.permute.xlu0 1
  %201 = vperm.xlu0 %200, %v33
  %v202 = vpop.permute.xlu0 %201
  %203 = vset.pattern.permute.xlu0 1
  %204 = vperm.xlu0 %203, %v34
  %v205 = vpop.permute.xlu0 %204
  %206 = vset.pattern.permute.xlu0 1
  %207 = vperm.xlu0 %206, %v35
  %v208 = vpop.permute.xlu0 %207
  %209 = vset.pattern.permute.xlu0 1
  %210 = vperm.xlu0 %209, %v36
  %v211 = vpop.permute.xlu0 %210
  %212 = vset.pattern.permute.xlu0 1
  %213 = vperm.xlu0 %212, %v37
  %v214 = vpop.permute.xlu0 %213
  %215 = vset.pattern.permute.xlu0 1
  %216 = vperm.xlu0 %215, %v38
  %v217 = vpop.permute.xlu0 %216
  %218 = vset.pattern.permute.xlu0 1
  %219 = vperm.xlu0 %218, %v39
  %v220 = vpop.permute.xlu0 %219
  %221 = vset.pattern.permute.xlu0 1
  %222 = vperm.xlu0 %221, %v40
  %v223 = vpop.permute.xlu0 %222
  %224 = vset.pattern.permute.xlu0 1
  %225 = vperm.xlu0 %224, %v41
  %v226 = vpop.permute.xlu0 %225
  %vm227 = vcmp.eq.s32.totalorder %v190, %v43
  %vm228 = vcmp.eq.s32.totalorder %v190, %v44
  %vm229 = vcmp.eq.s32.totalorder %v193, %v43
  %vm230 = vcmp.eq.s32.totalorder %v193, %v44
  %vm231 = vcmp.eq.s32.totalorder %v196, %v43
  %vm232 = vcmp.eq.s32.totalorder %v196, %v44
  %vm233 = vcmp.eq.s32.totalorder %v199, %v43
  %vm234 = vcmp.eq.s32.totalorder %v199, %v44
  %vm235 = vcmp.eq.s32.totalorder %v202, %v43
  %vm236 = vcmp.eq.s32.totalorder %v202, %v44
  %vm237 = vcmp.eq.s32.totalorder %v205, %v43
  %vm238 = vcmp.eq.s32.totalorder %v205, %v44
  %vm239 = vcmp.eq.s32.totalorder %v208, %v43
  %vm240 = vcmp.eq.s32.totalorder %v208, %v44
  %vm241 = vcmp.eq.s32.totalorder %v211, %v43
  %vm242 = vcmp.eq.s32.totalorder %v211, %v44
  %vm243 = vcmp.eq.s32.totalorder %v214, %v43
  %vm244 = vcmp.eq.s32.totalorder %v214, %v44
  %vm245 = vcmp.eq.s32.totalorder %v217, %v43
  %vm246 = vcmp.eq.s32.totalorder %v217, %v44
  %vm247 = vcmp.eq.s32.totalorder %v220, %v43
  %vm248 = vcmp.eq.s32.totalorder %v220, %v44
  %vm249 = vcmp.eq.s32.totalorder %v223, %v43
  %vm250 = vcmp.eq.s32.totalorder %v223, %v44
  %vm251 = vcmp.eq.s32.totalorder %v226, %v43
  %vm252 = vcmp.eq.s32.totalorder %v226, %v44
  %v253 = vsel %vm227, 1, 0
  %v254 = vsel %vm228, 1, 0
  %v255 = vsel %vm229, 1, 0
  %v256 = vsel %vm230, 1, 0
  %v257 = vsel %vm231, 1, 0
  %v258 = vsel %vm232, 1, 0
  %v259 = vsel %vm233, 1, 0
  %v260 = vsel %vm234, 1, 0
  %v261 = vsel %vm235, 1, 0
  %v262 = vsel %vm236, 1, 0
  %v263 = vsel %vm237, 1, 0
  %v264 = vsel %vm238, 1, 0
  %v265 = vsel %vm239, 1, 0
  %v266 = vsel %vm240, 1, 0
  %v267 = vsel %vm241, 1, 0
  %v268 = vsel %vm242, 1, 0
  %v269 = vsel %vm243, 1, 0
  %v270 = vsel %vm244, 1, 0
  %v271 = vsel %vm245, 1, 0
  %v272 = vsel %vm246, 1, 0
  %v273 = vsel %vm247, 1, 0
  %v274 = vsel %vm248, 1, 0
  %v275 = vsel %vm249, 1, 0
  %v276 = vsel %vm250, 1, 0
  %v277 = vsel %vm251, 1, 0
  %v278 = vsel %vm252, 1, 0
  %v279 = vcvt.s32.f32 %v253
  %v280 = vcvt.s32.f32 %v254
  %v281 = vcvt.s32.f32 %v255
  %v282 = vcvt.s32.f32 %v256
  %v283 = vcvt.s32.f32 %v257
  %v284 = vcvt.s32.f32 %v258
  %v285 = vcvt.s32.f32 %v259
  %v286 = vcvt.s32.f32 %v260
  %v287 = vcvt.s32.f32 %v261
  %v288 = vcvt.s32.f32 %v262
  %v289 = vcvt.s32.f32 %v263
  %v290 = vcvt.s32.f32 %v264
  %v291 = vcvt.s32.f32 %v265
  %v292 = vcvt.s32.f32 %v266
  %v293 = vcvt.s32.f32 %v267
  %v294 = vcvt.s32.f32 %v268
  %v295 = vcvt.s32.f32 %v269
  %v296 = vcvt.s32.f32 %v270
  %v297 = vcvt.s32.f32 %v271
  %v298 = vcvt.s32.f32 %v272
  %v299 = vcvt.s32.f32 %v273
  %v300 = vcvt.s32.f32 %v274
  %v301 = vcvt.s32.f32 %v275
  %v302 = vcvt.s32.f32 %v276
  %v303 = vcvt.s32.f32 %v277
  %v304 = vcvt.s32.f32 %v278
  %v305 = vadd.f32 %v162, %v279
  %v306 = vadd.f32 %v163, %v280
  %v307 = vadd.f32 %v164, %v281
  %v308 = vadd.f32 %v165, %v282
  %v309 = vadd.f32 %v166, %v283
  %v310 = vadd.f32 %v167, %v284
  %v311 = vadd.f32 %v168, %v285
  %v312 = vadd.f32 %v169, %v286
  %v313 = vadd.f32 %v170, %v287
  %v314 = vadd.f32 %v171, %v288
  %v315 = vadd.f32 %v172, %v289
  %v316 = vadd.f32 %v173, %v290
  %v317 = vadd.f32 %v174, %v291
  %v318 = vadd.f32 %v175, %v292
  %v319 = vadd.f32 %v176, %v293
  %v320 = vadd.f32 %v177, %v294
  %v321 = vadd.f32 %v178, %v295
  %v322 = vadd.f32 %v179, %v296
  %v323 = vadd.f32 %v180, %v297
  %v324 = vadd.f32 %v181, %v298
  %v325 = vadd.f32 %v182, %v299
  %v326 = vadd.f32 %v183, %v300
  %v327 = vadd.f32 %v184, %v301
  %v328 = vadd.f32 %v185, %v302
  %v329 = vadd.f32 %v186, %v303
  %v330 = vadd.f32 %v187, %v304
  %331 = vset.pattern.permute.xlu0 2
  %332 = vperm.xlu0 %331, %v29
  %v333 = vpop.permute.xlu0 %332
  %334 = vset.pattern.permute.xlu0 2
  %335 = vperm.xlu0 %334, %v30
  %v336 = vpop.permute.xlu0 %335
  %337 = vset.pattern.permute.xlu0 2
  %338 = vperm.xlu0 %337, %v31
  %v339 = vpop.permute.xlu0 %338
  %340 = vset.pattern.permute.xlu0 2
  %341 = vperm.xlu0 %340, %v32
  %v342 = vpop.permute.xlu0 %341
  %343 = vset.pattern.permute.xlu0 2
  %344 = vperm.xlu0 %343, %v33
  %v345 = vpop.permute.xlu0 %344
  %346 = vset.pattern.permute.xlu0 2
  %347 = vperm.xlu0 %346, %v34
  %v348 = vpop.permute.xlu0 %347
  %349 = vset.pattern.permute.xlu0 2
  %350 = vperm.xlu0 %349, %v35
  %v351 = vpop.permute.xlu0 %350
  %352 = vset.pattern.permute.xlu0 2
  %353 = vperm.xlu0 %352, %v36
  %v354 = vpop.permute.xlu0 %353
  %355 = vset.pattern.permute.xlu0 2
  %356 = vperm.xlu0 %355, %v37
  %v357 = vpop.permute.xlu0 %356
  %358 = vset.pattern.permute.xlu0 2
  %359 = vperm.xlu0 %358, %v38
  %v360 = vpop.permute.xlu0 %359
  %361 = vset.pattern.permute.xlu0 2
  %362 = vperm.xlu0 %361, %v39
  %v363 = vpop.permute.xlu0 %362
  %364 = vset.pattern.permute.xlu0 2
  %365 = vperm.xlu0 %364, %v40
  %v366 = vpop.permute.xlu0 %365
  %367 = vset.pattern.permute.xlu0 2
  %368 = vperm.xlu0 %367, %v41
  %v369 = vpop.permute.xlu0 %368
  %vm370 = vcmp.eq.s32.totalorder %v333, %v43
  %vm371 = vcmp.eq.s32.totalorder %v333, %v44
  %vm372 = vcmp.eq.s32.totalorder %v336, %v43
  %vm373 = vcmp.eq.s32.totalorder %v336, %v44
  %vm374 = vcmp.eq.s32.totalorder %v339, %v43
  %vm375 = vcmp.eq.s32.totalorder %v339, %v44
  %vm376 = vcmp.eq.s32.totalorder %v342, %v43
  %vm377 = vcmp.eq.s32.totalorder %v342, %v44
  %vm378 = vcmp.eq.s32.totalorder %v345, %v43
  %vm379 = vcmp.eq.s32.totalorder %v345, %v44
  %vm380 = vcmp.eq.s32.totalorder %v348, %v43
  %vm381 = vcmp.eq.s32.totalorder %v348, %v44
  %vm382 = vcmp.eq.s32.totalorder %v351, %v43
  %vm383 = vcmp.eq.s32.totalorder %v351, %v44
  %vm384 = vcmp.eq.s32.totalorder %v354, %v43
  %vm385 = vcmp.eq.s32.totalorder %v354, %v44
  %vm386 = vcmp.eq.s32.totalorder %v357, %v43
  %vm387 = vcmp.eq.s32.totalorder %v357, %v44
  %vm388 = vcmp.eq.s32.totalorder %v360, %v43
  %vm389 = vcmp.eq.s32.totalorder %v360, %v44
  %vm390 = vcmp.eq.s32.totalorder %v363, %v43
  %vm391 = vcmp.eq.s32.totalorder %v363, %v44
  %vm392 = vcmp.eq.s32.totalorder %v366, %v43
  %vm393 = vcmp.eq.s32.totalorder %v366, %v44
  %vm394 = vcmp.eq.s32.totalorder %v369, %v43
  %vm395 = vcmp.eq.s32.totalorder %v369, %v44
  %v396 = vsel %vm370, 1, 0
  %v397 = vsel %vm371, 1, 0
  %v398 = vsel %vm372, 1, 0
  %v399 = vsel %vm373, 1, 0
  %v400 = vsel %vm374, 1, 0
  %v401 = vsel %vm375, 1, 0
  %v402 = vsel %vm376, 1, 0
  %v403 = vsel %vm377, 1, 0
  %v404 = vsel %vm378, 1, 0
  %v405 = vsel %vm379, 1, 0
  %v406 = vsel %vm380, 1, 0
  %v407 = vsel %vm381, 1, 0
  %v408 = vsel %vm382, 1, 0
  %v409 = vsel %vm383, 1, 0
  %v410 = vsel %vm384, 1, 0
  %v411 = vsel %vm385, 1, 0
  %v412 = vsel %vm386, 1, 0
  %v413 = vsel %vm387, 1, 0
  %v414 = vsel %vm388, 1, 0
  %v415 = vsel %vm389, 1, 0
  %v416 = vsel %vm390, 1, 0
  %v417 = vsel %vm391, 1, 0
  %v418 = vsel %vm392, 1, 0
  %v419 = vsel %vm393, 1, 0
  %v420 = vsel %vm394, 1, 0
  %v421 = vsel %vm395, 1, 0
  %v422 = vcvt.s32.f32 %v396
  %v423 = vcvt.s32.f32 %v397
  %v424 = vcvt.s32.f32 %v398
  %v425 = vcvt.s32.f32 %v399
  %v426 = vcvt.s32.f32 %v400
  %v427 = vcvt.s32.f32 %v401
  %v428 = vcvt.s32.f32 %v402
  %v429 = vcvt.s32.f32 %v403
  %v430 = vcvt.s32.f32 %v404
  %v431 = vcvt.s32.f32 %v405
  %v432 = vcvt.s32.f32 %v406
  %v433 = vcvt.s32.f32 %v407
  %v434 = vcvt.s32.f32 %v408
  %v435 = vcvt.s32.f32 %v409
  %v436 = vcvt.s32.f32 %v410
  %v437 = vcvt.s32.f32 %v411
  %v438 = vcvt.s32.f32 %v412
  %v439 = vcvt.s32.f32 %v413
  %v440 = vcvt.s32.f32 %v414
  %v441 = vcvt.s32.f32 %v415
  %v442 = vcvt.s32.f32 %v416
  %v443 = vcvt.s32.f32 %v417
  %v444 = vcvt.s32.f32 %v418
  %v445 = vcvt.s32.f32 %v419
  %v446 = vcvt.s32.f32 %v420
  %v447 = vcvt.s32.f32 %v421
  %v448 = vadd.f32 %v305, %v422
  %v449 = vadd.f32 %v306, %v423
  %v450 = vadd.f32 %v307, %v424
  %v451 = vadd.f32 %v308, %v425
  %v452 = vadd.f32 %v309, %v426
  %v453 = vadd.f32 %v310, %v427
  %v454 = vadd.f32 %v311, %v428
  %v455 = vadd.f32 %v312, %v429
  %v456 = vadd.f32 %v313, %v430
  %v457 = vadd.f32 %v314, %v431
  %v458 = vadd.f32 %v315, %v432
  %v459 = vadd.f32 %v316, %v433
  %v460 = vadd.f32 %v317, %v434
  %v461 = vadd.f32 %v318, %v435
  %v462 = vadd.f32 %v319, %v436
  %v463 = vadd.f32 %v320, %v437
  %v464 = vadd.f32 %v321, %v438
  %v465 = vadd.f32 %v322, %v439
  %v466 = vadd.f32 %v323, %v440
  %v467 = vadd.f32 %v324, %v441
  %v468 = vadd.f32 %v325, %v442
  %v469 = vadd.f32 %v326, %v443
  %v470 = vadd.f32 %v327, %v444
  %v471 = vadd.f32 %v328, %v445
  %v472 = vadd.f32 %v329, %v446
  %v473 = vadd.f32 %v330, %v447
  %474 = vset.pattern.permute.xlu0 3
  %475 = vperm.xlu0 %474, %v29
  %v476 = vpop.permute.xlu0 %475
  %477 = vset.pattern.permute.xlu0 3
  %478 = vperm.xlu0 %477, %v30
  %v479 = vpop.permute.xlu0 %478
  %480 = vset.pattern.permute.xlu0 3
  %481 = vperm.xlu0 %480, %v31
  %v482 = vpop.permute.xlu0 %481
  %483 = vset.pattern.permute.xlu0 3
  %484 = vperm.xlu0 %483, %v32
  %v485 = vpop.permute.xlu0 %484
  %486 = vset.pattern.permute.xlu0 3
  %487 = vperm.xlu0 %486, %v33
  %v488 = vpop.permute.xlu0 %487
  %489 = vset.pattern.permute.xlu0 3
  %490 = vperm.xlu0 %489, %v34
  %v491 = vpop.permute.xlu0 %490
  %492 = vset.pattern.permute.xlu0 3
  %493 = vperm.xlu0 %492, %v35
  %v494 = vpop.permute.xlu0 %493
  %495 = vset.pattern.permute.xlu0 3
  %496 = vperm.xlu0 %495, %v36
  %v497 = vpop.permute.xlu0 %496
  %498 = vset.pattern.permute.xlu0 3
  %499 = vperm.xlu0 %498, %v37
  %v500 = vpop.permute.xlu0 %499
  %501 = vset.pattern.permute.xlu0 3
  %502 = vperm.xlu0 %501, %v38
  %v503 = vpop.permute.xlu0 %502
  %504 = vset.pattern.permute.xlu0 3
  %505 = vperm.xlu0 %504, %v39
  %v506 = vpop.permute.xlu0 %505
  %507 = vset.pattern.permute.xlu0 3
  %508 = vperm.xlu0 %507, %v40
  %v509 = vpop.permute.xlu0 %508
  %510 = vset.pattern.permute.xlu0 3
  %511 = vperm.xlu0 %510, %v41
  %v512 = vpop.permute.xlu0 %511
  %vm513 = vcmp.eq.s32.totalorder %v476, %v43
  %vm514 = vcmp.eq.s32.totalorder %v476, %v44
  %vm515 = vcmp.eq.s32.totalorder %v479, %v43
  %vm516 = vcmp.eq.s32.totalorder %v479, %v44
  %vm517 = vcmp.eq.s32.totalorder %v482, %v43
  %vm518 = vcmp.eq.s32.totalorder %v482, %v44
  %vm519 = vcmp.eq.s32.totalorder %v485, %v43
  %vm520 = vcmp.eq.s32.totalorder %v485, %v44
  %vm521 = vcmp.eq.s32.totalorder %v488, %v43
  %vm522 = vcmp.eq.s32.totalorder %v488, %v44
  %vm523 = vcmp.eq.s32.totalorder %v491, %v43
  %vm524 = vcmp.eq.s32.totalorder %v491, %v44
  %vm525 = vcmp.eq.s32.totalorder %v494, %v43
  %vm526 = vcmp.eq.s32.totalorder %v494, %v44
  %vm527 = vcmp.eq.s32.totalorder %v497, %v43
  %vm528 = vcmp.eq.s32.totalorder %v497, %v44
  %vm529 = vcmp.eq.s32.totalorder %v500, %v43
  %vm530 = vcmp.eq.s32.totalorder %v500, %v44
  %vm531 = vcmp.eq.s32.totalorder %v503, %v43
  %vm532 = vcmp.eq.s32.totalorder %v503, %v44
  %vm533 = vcmp.eq.s32.totalorder %v506, %v43
  %vm534 = vcmp.eq.s32.totalorder %v506, %v44
  %vm535 = vcmp.eq.s32.totalorder %v509, %v43
  %vm536 = vcmp.eq.s32.totalorder %v509, %v44
  %vm537 = vcmp.eq.s32.totalorder %v512, %v43
  %vm538 = vcmp.eq.s32.totalorder %v512, %v44
  %v539 = vsel %vm513, 1, 0
  %v540 = vsel %vm514, 1, 0
  %v541 = vsel %vm515, 1, 0
  %v542 = vsel %vm516, 1, 0
  %v543 = vsel %vm517, 1, 0
  %v544 = vsel %vm518, 1, 0
  %v545 = vsel %vm519, 1, 0
  %v546 = vsel %vm520, 1, 0
  %v547 = vsel %vm521, 1, 0
  %v548 = vsel %vm522, 1, 0
  %v549 = vsel %vm523, 1, 0
  %v550 = vsel %vm524, 1, 0
  %v551 = vsel %vm525, 1, 0
  %v552 = vsel %vm526, 1, 0
  %v553 = vsel %vm527, 1, 0
  %v554 = vsel %vm528, 1, 0
  %v555 = vsel %vm529, 1, 0
  %v556 = vsel %vm530, 1, 0
  %v557 = vsel %vm531, 1, 0
  %v558 = vsel %vm532, 1, 0
  %v559 = vsel %vm533, 1, 0
  %v560 = vsel %vm534, 1, 0
  %v561 = vsel %vm535, 1, 0
  %v562 = vsel %vm536, 1, 0
  %v563 = vsel %vm537, 1, 0
  %v564 = vsel %vm538, 1, 0
  %v565 = vcvt.s32.f32 %v539
  %v566 = vcvt.s32.f32 %v540
  %v567 = vcvt.s32.f32 %v541
  %v568 = vcvt.s32.f32 %v542
  %v569 = vcvt.s32.f32 %v543
  %v570 = vcvt.s32.f32 %v544
  %v571 = vcvt.s32.f32 %v545
  %v572 = vcvt.s32.f32 %v546
  %v573 = vcvt.s32.f32 %v547
  %v574 = vcvt.s32.f32 %v548
  %v575 = vcvt.s32.f32 %v549
  %v576 = vcvt.s32.f32 %v550
  %v577 = vcvt.s32.f32 %v551
  %v578 = vcvt.s32.f32 %v552
  %v579 = vcvt.s32.f32 %v553
  %v580 = vcvt.s32.f32 %v554
  %v581 = vcvt.s32.f32 %v555
  %v582 = vcvt.s32.f32 %v556
  %v583 = vcvt.s32.f32 %v557
  %v584 = vcvt.s32.f32 %v558
  %v585 = vcvt.s32.f32 %v559
  %v586 = vcvt.s32.f32 %v560
  %v587 = vcvt.s32.f32 %v561
  %v588 = vcvt.s32.f32 %v562
  %v589 = vcvt.s32.f32 %v563
  %v590 = vcvt.s32.f32 %v564
  %v591 = vadd.f32 %v448, %v565
  %v592 = vadd.f32 %v449, %v566
  %v593 = vadd.f32 %v450, %v567
  %v594 = vadd.f32 %v451, %v568
  %v595 = vadd.f32 %v452, %v569
  %v596 = vadd.f32 %v453, %v570
  %v597 = vadd.f32 %v454, %v571
  %v598 = vadd.f32 %v455, %v572
  %v599 = vadd.f32 %v456, %v573
  %v600 = vadd.f32 %v457, %v574
  %v601 = vadd.f32 %v458, %v575
  %v602 = vadd.f32 %v459, %v576
  %v603 = vadd.f32 %v460, %v577
  %v604 = vadd.f32 %v461, %v578
  %v605 = vadd.f32 %v462, %v579
  %v606 = vadd.f32 %v463, %v580
  %v607 = vadd.f32 %v464, %v581
  %v608 = vadd.f32 %v465, %v582
  %v609 = vadd.f32 %v466, %v583
  %v610 = vadd.f32 %v467, %v584
  %v611 = vadd.f32 %v468, %v585
  %v612 = vadd.f32 %v469, %v586
  %v613 = vadd.f32 %v470, %v587
  %v614 = vadd.f32 %v471, %v588
  %v615 = vadd.f32 %v472, %v589
  %v616 = vadd.f32 %v473, %v590
  %v617 = vld [vmem:[%s1] sm:$0xff]
  %v618 = vld [vmem:[%s1 + $0x8] sm:$0xff]
  %v619 = vld [vmem:[%s1 + $0x10] sm:$0xff]
  %v620 = vld [vmem:[%s1 + $0x18] sm:$0xff]
  %v621 = vld [vmem:[%s1 + $0x20] sm:$0xff]
  %v622 = vld [vmem:[%s1 + $0x28] sm:$0xff]
  %v623 = vld [vmem:[%s1 + $0x30] sm:$0xff]
  %v624 = vld [vmem:[%s1 + $0x38] sm:$0xff]
  %v625 = vld [vmem:[%s1 + $0x40] sm:$0xff]
  %v626 = vld [vmem:[%s1 + $0x48] sm:$0xff]
  %v627 = vld [vmem:[%s1 + $0x50] sm:$0xff]
  %v628 = vld [vmem:[%s1 + $0x58] sm:$0xff]
  %v629 = vld [vmem:[%s1 + $0x60] sm:$0xff]
  %v630 = vld [vmem:[%s1 + $0x68] sm:$0xff]
  %v631 = vld [vmem:[%s1 + $0x70] sm:$0xff]
  %v632 = vld [vmem:[%s1 + $0x78] sm:$0xff]
  %v633 = vld [vmem:[%s1 + $0x80] sm:$0xff]
  %v634 = vld [vmem:[%s1 + $0x88] sm:$0xff]
  %v635 = vld [vmem:[%s1 + $0x90] sm:$0xff]
  %v636 = vld [vmem:[%s1 + $0x98] sm:$0xff]
  %v637 = vld [vmem:[%s1 + $0xa0] sm:$0xff]
  %v638 = vld [vmem:[%s1 + $0xa8] sm:$0xff]
  %v639 = vld [vmem:[%s1 + $0xb0] sm:$0xff]
  %v640 = vld [vmem:[%s1 + $0xb8] sm:$0xff]
  %v641 = vld [vmem:[%s1 + $0xc0] sm:$0xff]
  %v642 = vld [vmem:[%s1 + $0xc8] sm:$0xff]
  %v643 = vld [vmem:[%s1 + $0xd0] sm:$0xff]
  %v644 = vld [vmem:[%s1 + $0xd8] sm:$0xff]
  %v645 = vld [vmem:[%s1 + $0xe0] sm:$0xff]
  %v646 = vld [vmem:[%s1 + $0xe8] sm:$0xff]
  %v647 = vld [vmem:[%s1 + $0xf0] sm:$0xff]
  %v648 = vld [vmem:[%s1 + $0xf8] sm:$0xff]
  %649 = vmatprep.subr.mxu0 0.0
  %650 = vmatpush1.msra.mxu0 %v617
  %651 = vmatprep.subr.mxu0 0.0
  %652 = vmatpush1.msra.mxu0 %v618
  %653 = vmatprep.subr.mxu0 0.0
  %654 = vmatpush1.msra.mxu0 %v619
  %655 = vmatprep.subr.mxu0 0.0
  %656 = vmatpush1.msra.mxu0 %v620
  %657 = vmatprep.subr.mxu0 0.0
  %658 = vmatpush1.msra.mxu0 %v621
  %659 = vmatprep.subr.mxu0 0.0
  %660 = vmatpush1.msra.mxu0 %v622
  %661 = vmatprep.subr.mxu0 0.0
  %662 = vmatpush1.msra.mxu0 %v623
  %663 = vmatprep.subr.mxu0 0.0
  %664 = vmatpush1.msra.mxu0 %v624
  %665 = vmatprep.subr.mxu0 0.0
  %666 = vmatpush1.msra.mxu0 %v625
  %667 = vmatprep.subr.mxu0 0.0
  %668 = vmatpush1.msra.mxu0 %v626
  %669 = vmatprep.subr.mxu0 0.0
  %670 = vmatpush1.msra.mxu0 %v627
  %671 = vmatprep.subr.mxu0 0.0
  %672 = vmatpush1.msra.mxu0 %v628
  %673 = vmatprep.subr.mxu0 0.0
  %674 = vmatpush1.msra.mxu0 %v629
  %675 = vmatprep.subr.mxu0 0.0
  %676 = vmatpush1.msra.mxu0 %v630
  %677 = vmatprep.subr.mxu0 0.0
  %678 = vmatpush1.msra.mxu0 %v631
  %679 = vmatprep.subr.mxu0 0.0
  %680 = vmatpush1.msra.mxu0 %v632
  %681 = vmatprep.subr.mxu0 0.0
  %682 = vmatpush1.msra.mxu0 %v633
  %683 = vmatprep.subr.mxu0 0.0
  %684 = vmatpush1.msra.mxu0 %v634
  %685 = vmatprep.subr.mxu0 0.0
  %686 = vmatpush1.msra.mxu0 %v635
  %687 = vmatprep.subr.mxu0 0.0
  %688 = vmatpush1.msra.mxu0 %v636
  %689 = vmatprep.subr.mxu0 0.0
  %690 = vmatpush1.msra.mxu0 %v637
  %691 = vmatprep.subr.mxu0 0.0
  %692 = vmatpush1.msra.mxu0 %v638
  %693 = vmatprep.subr.mxu0 0.0
  %694 = vmatpush1.msra.mxu0 %v639
  %695 = vmatprep.subr.mxu0 0.0
  %696 = vmatpush1.msra.mxu0 %v640
  %697 = vmatprep.subr.mxu0 0.0
  %698 = vmatpush1.msra.mxu0 %v641
  %699 = vmatprep.subr.mxu0 0.0
  %700 = vmatpush1.msra.mxu0 %v642
  %701 = vmatprep.subr.mxu0 0.0
  %702 = vmatpush1.msra.mxu0 %v643
  %703 = vmatprep.subr.mxu0 0.0
  %704 = vmatpush1.msra.mxu0 %v644
  %705 = vmatprep.subr.mxu0 0.0
  %706 = vmatpush1.msra.mxu0 %v645
  %707 = vmatprep.subr.mxu0 0.0
  %708 = vmatpush1.msra.mxu0 %v646
  %709 = vmatprep.subr.mxu0 0.0
  %710 = vmatpush1.msra.mxu0 %v647
  %711 = vmatprep.subr.mxu0 0.0
  %712 = vmatpush1.msra.mxu0 %v648
  %713 = vmatprep.mubr.f32.mxu0 %v592
  %714 = vmatmul.mubr.f32.gmra.mrb[0].mxu0 %v591
  %v715 = vpop.f32.mrb[0].mxu0
  %v716 = vadd.f32 0.0, %v715
  %v717 = vpop.f32.mrb[0].mxu0
  %718 = vmatprep.mubr.f32.mxu0 %v594
  %719 = vmatmul.mubr.f32.gmra.mrb[0].mxu0 %v593
  %v720 = vpop.f32.mrb[0].mxu0
  %v721 = vadd.f32 0.0, %v720
  %v722 = vpop.f32.mrb[0].mxu0
  %723 = vmatprep.mubr.f32.mxu0 %v596
  %724 = vmatmul.mubr.f32.gmra.mrb[0].mxu0 %v595
  %v725 = vpop.f32.mrb[0].mxu0
  %v726 = vadd.f32 0.0, %v725
  %v727 = vpop.f32.mrb[0].mxu0
  %728 = vmatprep.mubr.f32.mxu0 %v598
  %729 = vmatmul.mubr.f32.gmra.mrb[0].mxu0 %v597
  %v730 = vpop.f32.mrb[0].mxu0
  %v731 = vadd.f32 0.0, %v730
  %v732 = vpop.f32.mrb[0].mxu0
  %733 = vmatprep.mubr.f32.mxu0 %v600
  %734 = vmatmul.mubr.f32.gmra.mrb[0].mxu0 %v599
  %v735 = vpop.f32.mrb[0].mxu0
  %v736 = vadd.f32 0.0, %v735
  %v737 = vpop.f32.mrb[0].mxu0
  %738 = vmatprep.mubr.f32.mxu0 %v602
  %739 = vmatmul.mubr.f32.gmra.mrb[0].mxu0 %v601
  %v740 = vpop.f32.mrb[0].mxu0
  %v741 = vadd.f32 0.0, %v740
  %v742 = vpop.f32.mrb[0].mxu0
  %743 = vmatprep.mubr.f32.mxu0 %v604
  %744 = vmatmul.mubr.f32.gmra.mrb[0].mxu0 %v603
  %v745 = vpop.f32.mrb[0].mxu0
  %v746 = vadd.f32 0.0, %v745
  %v747 = vpop.f32.mrb[0].mxu0
  %748 = vmatprep.mubr.f32.mxu0 %v606
  %749 = vmatmul.mubr.f32.gmra.mrb[0].mxu0 %v605
  %v750 = vpop.f32.mrb[0].mxu0
  %v751 = vadd.f32 0.0, %v750
  %v752 = vpop.f32.mrb[0].mxu0
  %753 = vmatprep.mubr.f32.mxu0 %v608
  %754 = vmatmul.mubr.f32.gmra.mrb[0].mxu0 %v607
  %v755 = vpop.f32.mrb[0].mxu0
  %v756 = vadd.f32 0.0, %v755
  %v757 = vpop.f32.mrb[0].mxu0
  %758 = vmatprep.mubr.f32.mxu0 %v610
  %759 = vmatmul.mubr.f32.gmra.mrb[0].mxu0 %v609
  %v760 = vpop.f32.mrb[0].mxu0
  %v761 = vadd.f32 0.0, %v760
  %v762 = vpop.f32.mrb[0].mxu0
  %763 = vmatprep.mubr.f32.mxu0 %v612
  %764 = vmatmul.mubr.f32.gmra.mrb[0].mxu0 %v611
  %v765 = vpop.f32.mrb[0].mxu0
  %v766 = vadd.f32 0.0, %v765
  %v767 = vpop.f32.mrb[0].mxu0
  %768 = vmatprep.mubr.f32.mxu0 %v614
  %769 = vmatmul.mubr.f32.gmra.mrb[0].mxu0 %v613
  %v770 = vpop.f32.mrb[0].mxu0
  %v771 = vadd.f32 0.0, %v770
  %v772 = vpop.f32.mrb[0].mxu0
  %773 = vmatprep.mubr.f32.mxu0 %v616
  %774 = vmatmul.mubr.f32.gmra.mrb[0].mxu0 %v615
  %v775 = vpop.f32.mrb[0].mxu0
  %v776 = vadd.f32 0.0, %v775
  %v777 = vpop.f32.mrb[0].mxu0
  %778 = vdwg.mxu0
  %v779 = vmul.f32 %v716, %v746
  %v780 = vmul.f32 %v721, %v751
  %v781 = vmul.f32 %v726, %v756
  %v782 = vmul.f32 %v731, %v761
  %v783 = vmul.f32 %v736, %v766
  %v784 = vmul.f32 %v741, %v771
  %785 = vmatprep.subr.mxu0 0.0
  %786 = vmatpush1.msra.mxu0 1.0
  %787 = vmatprep.subr.mxu0 0.0
  %788 = vmatpush1.msra.mxu0 1.0
  %789 = vmatprep.subr.mxu0 0.0
  %790 = vmatpush1.msra.mxu0 1.0
  %791 = vmatprep.subr.mxu0 0.0
  %792 = vmatpush1.msra.mxu0 1.0
  %793 = vmatprep.subr.mxu0 0.0
  %794 = vmatpush1.msra.mxu0 1.0
  %795 = vmatprep.subr.mxu0 0.0
  %796 = vmatpush1.msra.mxu0 1.0
  %797 = vmatprep.subr.mxu0 0.0
  %798 = vmatpush1.msra.mxu0 1.0
  %799 = vmatprep.subr.mxu0 0.0
  %800 = vmatpush1.msra.mxu0 1.0
  %801 = vmatprep.subr.mxu0 0.0
  %802 = vmatpush1.msra.mxu0 1.0
  %803 = vmatprep.subr.mxu0 0.0
  %804 = vmatpush1.msra.mxu0 1.0
  %805 = vmatprep.subr.mxu0 0.0
  %806 = vmatpush1.msra.mxu0 1.0
  %807 = vmatprep.subr.mxu0 0.0
  %808 = vmatpush1.msra.mxu0 1.0
  %809 = vmatprep.subr.mxu0 0.0
  %810 = vmatpush1.msra.mxu0 1.0
  %811 = vmatprep.subr.mxu0 0.0
  %812 = vmatpush1.msra.mxu0 1.0
  %813 = vmatprep.subr.mxu0 0.0
  %814 = vmatpush1.msra.mxu0 1.0
  %815 = vmatprep.subr.mxu0 0.0
  %816 = vmatpush1.msra.mxu0 1.0
  %817 = vmatprep.subr.mxu0 0.0
  %818 = vmatpush1.msra.mxu0 0.0
  %819 = vmatprep.subr.mxu0 0.0
  %820 = vmatpush1.msra.mxu0 0.0
  %821 = vmatprep.subr.mxu0 0.0
  %822 = vmatpush1.msra.mxu0 0.0
  %823 = vmatprep.subr.mxu0 0.0
  %824 = vmatpush1.msra.mxu0 0.0
  %825 = vmatprep.subr.mxu0 0.0
  %826 = vmatpush1.msra.mxu0 0.0
  %827 = vmatprep.subr.mxu0 0.0
  %828 = vmatpush1.msra.mxu0 0.0
  %829 = vmatprep.subr.mxu0 0.0
  %830 = vmatpush1.msra.mxu0 0.0
  %831 = vmatprep.subr.mxu0 0.0
  %832 = vmatpush1.msra.mxu0 0.0
  %833 = vmatprep.subr.mxu0 0.0
  %834 = vmatpush1.msra.mxu0 0.0
  %835 = vmatprep.subr.mxu0 0.0
  %836 = vmatpush1.msra.mxu0 0.0
  %837 = vmatprep.subr.mxu0 0.0
  %838 = vmatpush1.msra.mxu0 0.0
  %839 = vmatprep.subr.mxu0 0.0
  %840 = vmatpush1.msra.mxu0 0.0
  %841 = vmatprep.subr.mxu0 0.0
  %842 = vmatpush1.msra.mxu0 0.0
  %843 = vmatprep.subr.mxu0 0.0
  %844 = vmatpush1.msra.mxu0 0.0
  %845 = vmatprep.subr.mxu0 0.0
  %846 = vmatpush1.msra.mxu0 0.0
  %847 = vmatprep.subr.mxu0 0.0
  %848 = vmatpush1.msra.mxu0 0.0
  %849 = vmatprep.mubr.f32.mxu0 0.0
  %850 = vmatmul.mubr.f32.gmra.mrb[0].mxu0 %v779
  %v851 = vpop.f32.mrb[0].mxu0
  %v852 = vadd.f32 0.0, %v851
  %v853 = vpop.f32.mrb[0].mxu0
  %854 = vmatprep.mubr.f32.mxu0 0.0
  %855 = vmatmul.mubr.f32.gmra.mrb[0].mxu0 %v780
  %v856 = vpop.f32.mrb[0].mxu0
  %v857 = vadd.f32 0.0, %v856
  %v858 = vpop.f32.mrb[0].mxu0
  %859 = vmatprep.mubr.f32.mxu0 0.0
  %860 = vmatmul.mubr.f32.gmra.mrb[0].mxu0 %v781
  %v861 = vpop.f32.mrb[0].mxu0
  %v862 = vadd.f32 0.0, %v861
  %v863 = vpop.f32.mrb[0].mxu0
  %864 = vmatprep.mubr.f32.mxu0 0.0
  %865 = vmatmul.mubr.f32.gmra.mrb[0].mxu0 %v782
  %v866 = vpop.f32.mrb[0].mxu0
  %v867 = vadd.f32 0.0, %v866
  %v868 = vpop.f32.mrb[0].mxu0
  %869 = vmatprep.mubr.f32.mxu0 0.0
  %870 = vmatmul.mubr.f32.gmra.mrb[0].mxu0 %v783
  %v871 = vpop.f32.mrb[0].mxu0
  %v872 = vadd.f32 0.0, %v871
  %v873 = vpop.f32.mrb[0].mxu0
  %874 = vmatprep.mubr.f32.mxu0 0.0
  %875 = vmatmul.mubr.f32.gmra.mrb[0].mxu0 %v784
  %v876 = vpop.f32.mrb[0].mxu0
  %v877 = vadd.f32 0.0, %v876
  %v878 = vpop.f32.mrb[0].mxu0
  %879 = vdwg.mxu0
  %vm880 = vcmp.gt.f32.partialorder %v862, %v852
  %vm881 = vcmp.gt.f32.partialorder %v867, %v857
  %v882 = vsel %vm880, %v862, %v852
  %v883 = vsel %vm881, %v867, %v857
  %v884 = vsel %vm880, 1, 0
  %v885 = vsel %vm881, 1, 0
  %886 = vset.pattern.permute.xlu0 0
  %887 = vperm.xlu0 %886, %v884
  %v888 = vpop.permute.xlu0 %887
  %889 = vset.pattern.permute.xlu0 0
  %890 = vperm.xlu0 %889, %v885
  %v891 = vpop.permute.xlu0 %890
  %vm892 = vcmp.eq.s32.totalorder %v888, 1
  %vm893 = vcmp.eq.s32.totalorder %v891, 1
  %v894 = vsel %vm892, %v726, %v716
  %v895 = vsel %vm893, %v731, %v721
  %vm896 = vcmp.gt.f32.partialorder %v872, %v882
  %vm897 = vcmp.gt.f32.partialorder %v877, %v883
  %v898 = vsel %vm896, 1, 0
  %v899 = vsel %vm897, 1, 0
  %900 = vset.pattern.permute.xlu0 0
  %901 = vperm.xlu0 %900, %v898
  %v902 = vpop.permute.xlu0 %901
  %903 = vset.pattern.permute.xlu0 0
  %904 = vperm.xlu0 %903, %v899
  %v905 = vpop.permute.xlu0 %904
  %vm906 = vcmp.eq.s32.totalorder %v902, 1
  %vm907 = vcmp.eq.s32.totalorder %v905, 1
  %v908 = vsel %vm906, %v736, %v894
  %v909 = vsel %vm907, %v741, %v895
  %v910 = vmul.f32 %v908, %v746
  %v911 = vmul.f32 %v909, %v751
  %v912 = vld [vmem:[%s2] sm:$0xff]
  %v913 = vld [vmem:[%s2 + $0x8] sm:$0xff]
  %v914 = vld [vmem:[%s2 + $0x10] sm:$0xff]
  %v915 = vld [vmem:[%s2 + $0x18] sm:$0xff]
  %v916 = vld [vmem:[%s2 + $0x20] sm:$0xff]
  %v917 = vld [vmem:[%s2 + $0x28] sm:$0xff]
  %v918 = vld [vmem:[%s2 + $0x30] sm:$0xff]
  %v919 = vld [vmem:[%s2 + $0x38] sm:$0xff]
  %v920 = vld [vmem:[%s2 + $0x40] sm:$0xff]
  %v921 = vld [vmem:[%s2 + $0x48] sm:$0xff]
  %v922 = vld [vmem:[%s2 + $0x50] sm:$0xff]
  %v923 = vld [vmem:[%s2 + $0x58] sm:$0xff]
  %v924 = vld [vmem:[%s2 + $0x60] sm:$0xff]
  %v925 = vld [vmem:[%s2 + $0x68] sm:$0xff]
  %v926 = vld [vmem:[%s2 + $0x70] sm:$0xff]
  %v927 = vld [vmem:[%s2 + $0x78] sm:$0xff]
  %928 = vmatprep.subr.mxu0 0.0
  %929 = vmatpush1.msra.mxu0 %v912
  %930 = vmatprep.subr.mxu0 0.0
  %931 = vmatpush1.msra.mxu0 %v913
  %932 = vmatprep.subr.mxu0 0.0
  %933 = vmatpush1.msra.mxu0 %v914
  %934 = vmatprep.subr.mxu0 0.0
  %935 = vmatpush1.msra.mxu0 %v915
  %936 = vmatprep.subr.mxu0 0.0
  %937 = vmatpush1.msra.mxu0 %v916
  %938 = vmatprep.subr.mxu0 0.0
  %939 = vmatpush1.msra.mxu0 %v917
  %940 = vmatprep.subr.mxu0 0.0
  %941 = vmatpush1.msra.mxu0 %v918
  %942 = vmatprep.subr.mxu0 0.0
  %943 = vmatpush1.msra.mxu0 %v919
  %944 = vmatprep.subr.mxu0 0.0
  %945 = vmatpush1.msra.mxu0 %v920
  %946 = vmatprep.subr.mxu0 0.0
  %947 = vmatpush1.msra.mxu0 %v921
  %948 = vmatprep.subr.mxu0 0.0
  %949 = vmatpush1.msra.mxu0 %v922
  %950 = vmatprep.subr.mxu0 0.0
  %951 = vmatpush1.msra.mxu0 %v923
  %952 = vmatprep.subr.mxu0 0.0
  %953 = vmatpush1.msra.mxu0 %v924
  %954 = vmatprep.subr.mxu0 0.0
  %955 = vmatpush1.msra.mxu0 %v925
  %956 = vmatprep.subr.mxu0 0.0
  %957 = vmatpush1.msra.mxu0 %v926
  %958 = vmatprep.subr.mxu0 0.0
  %959 = vmatpush1.msra.mxu0 %v927
  %960 = vmatprep.subr.mxu0 0.0
  %961 = vmatpush1.msra.mxu0 0.0
  %962 = vmatprep.subr.mxu0 0.0
  %963 = vmatpush1.msra.mxu0 0.0
  %964 = vmatprep.subr.mxu0 0.0
  %965 = vmatpush1.msra.mxu0 0.0
  %966 = vmatprep.subr.mxu0 0.0
  %967 = vmatpush1.msra.mxu0 0.0
  %968 = vmatprep.subr.mxu0 0.0
  %969 = vmatpush1.msra.mxu0 0.0
  %970 = vmatprep.subr.mxu0 0.0
  %971 = vmatpush1.msra.mxu0 0.0
  %972 = vmatprep.subr.mxu0 0.0
  %973 = vmatpush1.msra.mxu0 0.0
  %974 = vmatprep.subr.mxu0 0.0
  %975 = vmatpush1.msra.mxu0 0.0
  %976 = vmatprep.subr.mxu0 0.0
  %977 = vmatpush1.msra.mxu0 0.0
  %978 = vmatprep.subr.mxu0 0.0
  %979 = vmatpush1.msra.mxu0 0.0
  %980 = vmatprep.subr.mxu0 0.0
  %981 = vmatpush1.msra.mxu0 0.0
  %982 = vmatprep.subr.mxu0 0.0
  %983 = vmatpush1.msra.mxu0 0.0
  %984 = vmatprep.subr.mxu0 0.0
  %985 = vmatpush1.msra.mxu0 0.0
  %986 = vmatprep.subr.mxu0 0.0
  %987 = vmatpush1.msra.mxu0 0.0
  %988 = vmatprep.subr.mxu0 0.0
  %989 = vmatpush1.msra.mxu0 0.0
  %990 = vmatprep.subr.mxu0 0.0
  %991 = vmatpush1.msra.mxu0 0.0
  %992 = vmatprep.mubr.f32.mxu0 0.0
  %993 = vmatmul.mubr.f32.gmra.mrb[0].mxu0 %v910
  %v994 = vpop.f32.mrb[0].mxu0
  %v995 = vadd.f32 0.0, %v994
  %v996 = vpop.f32.mrb[0].mxu0
  %997 = vmatprep.mubr.f32.mxu0 0.0
  %998 = vmatmul.mubr.f32.gmra.mrb[0].mxu0 %v911
  %v999 = vpop.f32.mrb[0].mxu0
  %v1000 = vadd.f32 0.0, %v999
  %v1001 = vpop.f32.mrb[0].mxu0
  %1002 = vdwg.mxu0
  %vm1003 = vcmp.ne.f32.partialorder %v995, 0.0
  %vm1004 = vcmp.ne.f32.partialorder %v1000, 0.0
  %v1005 = vsel %vm1003, 1, 0
  %v1006 = vsel %vm1004, 1, 0
  %v1007 = vcvt.s32.f32 %v1005
  %v1008 = vcvt.s32.f32 %v1006
  %v1009 = vsub.f32 %v1007, 1.0
  %v1010 = vsub.f32 %v1008, 1.0
  %v1011 = vmul.f32 %v1009, 9999.0
  %v1012 = vmul.f32 %v1010, 9999.0
  %v1013 = vadd.f32 %v995, %v1011
  %v1014 = vadd.f32 %v1000, %v1012
  %vm1015 = vcmask 31744
  %v1016 = vsel %vm1015, %v1013, -inf
  %1017 = vmax.xlane.f32.xlu0 %v1016
  %v1018 = vpop.xlane.xlu0 %1017
  %v1019 = vsel %vm1015, %v1014, -inf
  %1020 = vmax.xlane.f32.xlu0 %v1019
  %v1021 = vpop.xlane.xlu0 %1020
  %v1022 = vsub.f32 %v1013, %v1018
  %v1023 = vsub.f32 %v1014, %v1021
  %v1024 = vmul.f32 %v1022, 1.442695
  %v1025 = vpow.pop %v1024
  %v1026 = vmul.f32 %v1023, 1.442695
  %v1027 = vpow.pop %v1026
  %v1028 = vsel %vm1015, %v1025, 0.0
  %1029 = vadd.xlane.f32.xlu0 %v1028
  %v1030 = vpop.xlane.xlu0 %1029
  %v1031 = vsel %vm1015, %v1027, 0.0
  %1032 = vadd.xlane.f32.xlu0 %v1031
  %v1033 = vpop.xlane.xlu0 %1032
  %v1034 = vrcp.pop %v1030
  %v1035 = vmul.f32 %v1025, %v1034
  %v1036 = vrcp.pop %v1033
  %v1037 = vmul.f32 %v1027, %v1036
  %v1038 = vld [vmem:[%s3] sm:$0xf]
  %v1040 = vsel %vm1015, %v1035, 0
  %v1043 = vsel %vm1015, %v1037, 0
  %vm1045 = vcmask 1043456
  %v1047 = vsel %vm1045, %v1038, 0
  %1049 = vmatprep.subr.mxu0 0.0
  %1050 = vmatpush1.msra.mxu0 %v1047
  %1051 = vmatprep.subr.mxu0 0.0
  %1052 = vmatpush1.msra.mxu0 0.0
  %1053 = vmatprep.subr.mxu0 0.0
  %1054 = vmatpush1.msra.mxu0 0.0
  %1055 = vmatprep.subr.mxu0 0.0
  %1056 = vmatpush1.msra.mxu0 0.0
  %1057 = vmatprep.subr.mxu0 0.0
  %1058 = vmatpush1.msra.mxu0 0.0
  %1059 = vmatprep.subr.mxu0 0.0
  %1060 = vmatpush1.msra.mxu0 0.0
  %1061 = vmatprep.subr.mxu0 0.0
  %1062 = vmatpush1.msra.mxu0 0.0
  %1063 = vmatprep.subr.mxu0 0.0
  %1064 = vmatpush1.msra.mxu0 0.0
  %1065 = vmatprep.subr.mxu0 0.0
  %1066 = vmatpush1.msra.mxu0 0.0
  %1067 = vmatprep.subr.mxu0 0.0
  %1068 = vmatpush1.msra.mxu0 0.0
  %1069 = vmatprep.subr.mxu0 0.0
  %1070 = vmatpush1.msra.mxu0 0.0
  %1071 = vmatprep.subr.mxu0 0.0
  %1072 = vmatpush1.msra.mxu0 0.0
  %1073 = vmatprep.subr.mxu0 0.0
  %1074 = vmatpush1.msra.mxu0 0.0
  %1075 = vmatprep.subr.mxu0 0.0
  %1076 = vmatpush1.msra.mxu0 0.0
  %1077 = vmatprep.subr.mxu0 0.0
  %1078 = vmatpush1.msra.mxu0 0.0
  %1079 = vmatprep.subr.mxu0 0.0
  %1080 = vmatpush1.msra.mxu0 0.0
  %1081 = vmatprep.subr.mxu0 0.0
  %1082 = vmatpush1.msra.mxu0 0.0
  %1083 = vmatprep.subr.mxu0 0.0
  %1084 = vmatpush1.msra.mxu0 0.0
  %1085 = vmatprep.subr.mxu0 0.0
  %1086 = vmatpush1.msra.mxu0 0.0
  %1087 = vmatprep.subr.mxu0 0.0
  %1088 = vmatpush1.msra.mxu0 0.0
  %1089 = vmatprep.subr.mxu0 0.0
  %1090 = vmatpush1.msra.mxu0 0.0
  %1091 = vmatprep.subr.mxu0 0.0
  %1092 = vmatpush1.msra.mxu0 0.0
  %1093 = vmatprep.subr.mxu0 0.0
  %1094 = vmatpush1.msra.mxu0 0.0
  %1095 = vmatprep.subr.mxu0 0.0
  %1096 = vmatpush1.msra.mxu0 0.0
  %1097 = vmatprep.subr.mxu0 0.0
  %1098 = vmatpush1.msra.mxu0 0.0
  %1099 = vmatprep.subr.mxu0 0.0
  %1100 = vmatpush1.msra.mxu0 0.0
  %1101 = vmatprep.subr.mxu0 0.0
  %1102 = vmatpush1.msra.mxu0 0.0
  %1103 = vmatprep.subr.mxu0 0.0
  %1104 = vmatpush1.msra.mxu0 0.0
  %1105 = vmatprep.subr.mxu0 0.0
  %1106 = vmatpush1.msra.mxu0 0.0
  %1107 = vmatprep.subr.mxu0 0.0
  %1108 = vmatpush1.msra.mxu0 0.0
  %1109 = vmatprep.subr.mxu0 0.0
  %1110 = vmatpush1.msra.mxu0 0.0
  %1111 = vmatprep.subr.mxu0 0.0
  %1112 = vmatpush1.msra.mxu0 0.0
  %1113 = vmatprep.mubr.f32.mxu0 0.0
  %1114 = vmatmul.mubr.f32.gmra.mrb[0].mxu0 %v1040
  %v1115 = vpop.f32.mrb[0].mxu0
  %v1116 = vadd.f32 0.0, %v1115
  %v1117 = vpop.f32.mrb[0].mxu0
  %1118 = vmatprep.mubr.f32.mxu0 0.0
  %1119 = vmatmul.mubr.f32.gmra.mrb[0].mxu0 %v1043
  %v1120 = vpop.f32.mrb[0].mxu0
  %v1121 = vadd.f32 0.0, %v1120
  %v1122 = vpop.f32.mrb[0].mxu0
  %1123 = vdwg.mxu0
  %v1124 = vmul.f32 %v1116, %v908
  %v1125 = vmul.f32 %v1121, %v909
  %v1126 = vld [vmem:[%s4] sm:$0xff]
  %v1127 = vld [vmem:[%s4 + $0x8] sm:$0xff]
  %v1128 = vld [vmem:[%s4 + $0x10] sm:$0xff]
  %v1129 = vld [vmem:[%s4 + $0x18] sm:$0xff]
  %v1130 = vld [vmem:[%s4 + $0x20] sm:$0xff]
  %v1131 = vld [vmem:[%s4 + $0x28] sm:$0xff]
  %v1132 = vld [vmem:[%s4 + $0x30] sm:$0xff]
  %v1133 = vld [vmem:[%s4 + $0x38] sm:$0xff]
  %v1134 = vld [vmem:[%s4 + $0x40] sm:$0xff]
  %v1135 = vld [vmem:[%s4 + $0x48] sm:$0xff]
  %v1136 = vld [vmem:[%s4 + $0x50] sm:$0xff]
  %v1137 = vld [vmem:[%s4 + $0x58] sm:$0xff]
  %v1138 = vld [vmem:[%s4 + $0x60] sm:$0xff]
  %v1139 = vld [vmem:[%s4 + $0x68] sm:$0xff]
  %v1140 = vld [vmem:[%s4 + $0x70] sm:$0xff]
  %v1141 = vld [vmem:[%s4 + $0x78] sm:$0xff]
  %1142 = vmatprep.subr.mxu0 0.0
  %1143 = vmatpush1.msra.mxu0 %v1126
  %1144 = vmatprep.subr.mxu0 0.0
  %1145 = vmatpush1.msra.mxu0 %v1127
  %1146 = vmatprep.subr.mxu0 0.0
  %1147 = vmatpush1.msra.mxu0 %v1128
  %1148 = vmatprep.subr.mxu0 0.0
  %1149 = vmatpush1.msra.mxu0 %v1129
  %1150 = vmatprep.subr.mxu0 0.0
  %1151 = vmatpush1.msra.mxu0 %v1130
  %1152 = vmatprep.subr.mxu0 0.0
  %1153 = vmatpush1.msra.mxu0 %v1131
  %1154 = vmatprep.subr.mxu0 0.0
  %1155 = vmatpush1.msra.mxu0 %v1132
  %1156 = vmatprep.subr.mxu0 0.0
  %1157 = vmatpush1.msra.mxu0 %v1133
  %1158 = vmatprep.subr.mxu0 0.0
  %1159 = vmatpush1.msra.mxu0 %v1134
  %1160 = vmatprep.subr.mxu0 0.0
  %1161 = vmatpush1.msra.mxu0 %v1135
  %1162 = vmatprep.subr.mxu0 0.0
  %1163 = vmatpush1.msra.mxu0 %v1136
  %1164 = vmatprep.subr.mxu0 0.0
  %1165 = vmatpush1.msra.mxu0 %v1137
  %1166 = vmatprep.subr.mxu0 0.0
  %1167 = vmatpush1.msra.mxu0 %v1138
  %1168 = vmatprep.subr.mxu0 0.0
  %1169 = vmatpush1.msra.mxu0 %v1139
  %1170 = vmatprep.subr.mxu0 0.0
  %1171 = vmatpush1.msra.mxu0 %v1140
  %1172 = vmatprep.subr.mxu0 0.0
  %1173 = vmatpush1.msra.mxu0 %v1141
  %1174 = vmatprep.subr.mxu0 0.0
  %1175 = vmatpush1.msra.mxu0 0.0
  %1176 = vmatprep.subr.mxu0 0.0
  %1177 = vmatpush1.msra.mxu0 0.0
  %1178 = vmatprep.subr.mxu0 0.0
  %1179 = vmatpush1.msra.mxu0 0.0
  %1180 = vmatprep.subr.mxu0 0.0
  %1181 = vmatpush1.msra.mxu0 0.0
  %1182 = vmatprep.subr.mxu0 0.0
  %1183 = vmatpush1.msra.mxu0 0.0
  %1184 = vmatprep.subr.mxu0 0.0
  %1185 = vmatpush1.msra.mxu0 0.0
  %1186 = vmatprep.subr.mxu0 0.0
  %1187 = vmatpush1.msra.mxu0 0.0
  %1188 = vmatprep.subr.mxu0 0.0
  %1189 = vmatpush1.msra.mxu0 0.0
  %1190 = vmatprep.subr.mxu0 0.0
  %1191 = vmatpush1.msra.mxu0 0.0
  %1192 = vmatprep.subr.mxu0 0.0
  %1193 = vmatpush1.msra.mxu0 0.0
  %1194 = vmatprep.subr.mxu0 0.0
  %1195 = vmatpush1.msra.mxu0 0.0
  %1196 = vmatprep.subr.mxu0 0.0
  %1197 = vmatpush1.msra.mxu0 0.0
  %1198 = vmatprep.subr.mxu0 0.0
  %1199 = vmatpush1.msra.mxu0 0.0
  %1200 = vmatprep.subr.mxu0 0.0
  %1201 = vmatpush1.msra.mxu0 0.0
  %1202 = vmatprep.subr.mxu0 0.0
  %1203 = vmatpush1.msra.mxu0 0.0
  %1204 = vmatprep.subr.mxu0 0.0
  %1205 = vmatpush1.msra.mxu0 0.0
  %1206 = vmatprep.mubr.f32.mxu0 0.0
  %1207 = vmatmul.mubr.f32.gmra.mrb[0].mxu0 %v1124
  %v1208 = vpop.f32.mrb[0].mxu0
  %v1209 = vadd.f32 0.0, %v1208
  %v1210 = vpop.f32.mrb[0].mxu0
  %1211 = vmatprep.mubr.f32.mxu0 0.0
  %1212 = vmatmul.mubr.f32.gmra.mrb[0].mxu0 %v1125
  %v1213 = vpop.f32.mrb[0].mxu0
  %v1214 = vadd.f32 0.0, %v1213
  %v1215 = vpop.f32.mrb[0].mxu0
  %1216 = vdwg.mxu0
  %v1217 = vld [vmem:[%s5] sm:$0xf]
  %vm1218 = vcmask 130048
  %v1220 = vsel %vm1218, %v1217, 0
  %1222 = vmatprep.subr.mxu0 0.0
  %1223 = vmatpush1.msra.mxu0 %v1209
  %1224 = vmatprep.subr.mxu0 0.0
  %1225 = vmatpush1.msra.mxu0 %v1214
  %1226 = vmatprep.subr.mxu0 0.0
  %1227 = vmatpush1.msra.mxu0 0.0
  %1228 = vmatprep.subr.mxu0 0.0
  %1229 = vmatpush1.msra.mxu0 0.0
  %1230 = vmatprep.subr.mxu0 0.0
  %1231 = vmatpush1.msra.mxu0 0.0
  %1232 = vmatprep.subr.mxu0 0.0
  %1233 = vmatpush1.msra.mxu0 0.0
  %1234 = vmatprep.subr.mxu0 0.0
  %1235 = vmatpush1.msra.mxu0 0.0
  %1236 = vmatprep.subr.mxu0 0.0
  %1237 = vmatpush1.msra.mxu0 0.0
  %1238 = vmatprep.subr.mxu0 0.0
  %1239 = vmatpush1.msra.mxu0 0.0
  %1240 = vmatprep.subr.mxu0 0.0
  %1241 = vmatpush1.msra.mxu0 0.0
  %1242 = vmatprep.subr.mxu0 0.0
  %1243 = vmatpush1.msra.mxu0 0.0
  %1244 = vmatprep.subr.mxu0 0.0
  %1245 = vmatpush1.msra.mxu0 0.0
  %1246 = vmatprep.subr.mxu0 0.0
  %1247 = vmatpush1.msra.mxu0 0.0
  %1248 = vmatprep.subr.mxu0 0.0
  %1249 = vmatpush1.msra.mxu0 0.0
  %1250 = vmatprep.subr.mxu0 0.0
  %1251 = vmatpush1.msra.mxu0 0.0
  %1252 = vmatprep.subr.mxu0 0.0
  %1253 = vmatpush1.msra.mxu0 0.0
  %1254 = vmatprep.subr.mxu0 0.0
  %1255 = vmatpush1.msra.mxu0 0.0
  %1256 = vmatprep.subr.mxu0 0.0
  %1257 = vmatpush1.msra.mxu0 0.0
  %1258 = vmatprep.subr.mxu0 0.0
  %1259 = vmatpush1.msra.mxu0 0.0
  %1260 = vmatprep.subr.mxu0 0.0
  %1261 = vmatpush1.msra.mxu0 0.0
  %1262 = vmatprep.subr.mxu0 0.0
  %1263 = vmatpush1.msra.mxu0 0.0
  %1264 = vmatprep.subr.mxu0 0.0
  %1265 = vmatpush1.msra.mxu0 0.0
  %1266 = vmatprep.subr.mxu0 0.0
  %1267 = vmatpush1.msra.mxu0 0.0
  %1268 = vmatprep.subr.mxu0 0.0
  %1269 = vmatpush1.msra.mxu0 0.0
  %1270 = vmatprep.subr.mxu0 0.0
  %1271 = vmatpush1.msra.mxu0 0.0
  %1272 = vmatprep.subr.mxu0 0.0
  %1273 = vmatpush1.msra.mxu0 0.0
  %1274 = vmatprep.subr.mxu0 0.0
  %1275 = vmatpush1.msra.mxu0 0.0
  %1276 = vmatprep.subr.mxu0 0.0
  %1277 = vmatpush1.msra.mxu0 0.0
  %1278 = vmatprep.subr.mxu0 0.0
  %1279 = vmatpush1.msra.mxu0 0.0
  %1280 = vmatprep.subr.mxu0 0.0
  %1281 = vmatpush1.msra.mxu0 0.0
  %1282 = vmatprep.subr.mxu0 0.0
  %1283 = vmatpush1.msra.mxu0 0.0
  %1284 = vmatprep.subr.mxu0 0.0
  %1285 = vmatpush1.msra.mxu0 0.0
  %1286 = vmatprep.mubr.f32.mxu0 0.0
  %1287 = vmatmul.mubr.f32.gmra.mrb[0].mxu0 %v1220
  %v1288 = vpop.f32.mrb[0].mxu0
  %v1289 = vadd.f32 0.0, %v1288
  %v1290 = vpop.f32.mrb[0].mxu0
  %1291 = vdwg.mxu0
  %v1292 = vld [vmem:[%s6] sm:$0xff]
  %v1293 = vld [vmem:[%s6 + $0x8] sm:$0xff]
  %v1294 = vld [vmem:[%s6 + $0x10] sm:$0xff]
  %v1295 = vld [vmem:[%s6 + $0x18] sm:$0xff]
  %v1296 = vld [vmem:[%s6 + $0x20] sm:$0xff]
  %v1297 = vld [vmem:[%s6 + $0x28] sm:$0xff]
  %v1298 = vld [vmem:[%s6 + $0x30] sm:$0xff]
  %v1299 = vld [vmem:[%s6 + $0x38] sm:$0xff]
  %v1300 = vld [vmem:[%s6 + $0x40] sm:$0xff]
  %v1301 = vld [vmem:[%s6 + $0x48] sm:$0xff]
  %v1302 = vld [vmem:[%s6 + $0x50] sm:$0xff]
  %v1303 = vld [vmem:[%s6 + $0x58] sm:$0xff]
  %v1304 = vld [vmem:[%s6 + $0x60] sm:$0xff]
  %v1305 = vld [vmem:[%s6 + $0x68] sm:$0xff]
  %v1306 = vld [vmem:[%s6 + $0x70] sm:$0xff]
  %v1307 = vld [vmem:[%s6 + $0x78] sm:$0xff]
  %v1308 = vld [vmem:[%s6 + $0x80] sm:$0xff]
  %v1309 = vld [vmem:[%s6 + $0x88] sm:$0xff]
  %v1310 = vld [vmem:[%s6 + $0x90] sm:$0xff]
  %v1311 = vld [vmem:[%s6 + $0x98] sm:$0xff]
  %v1312 = vld [vmem:[%s6 + $0xa0] sm:$0xff]
  %v1313 = vld [vmem:[%s6 + $0xa8] sm:$0xff]
  %v1314 = vld [vmem:[%s6 + $0xb0] sm:$0xff]
  %v1315 = vld [vmem:[%s6 + $0xb8] sm:$0xff]
  %vm1316 = vcmask 261120
  %v1318 = vsel %vm1316, %v1289, 0
  %1320 = vmatprep.subr.mxu0 %v1305
  %1321 = vmatpush1.msra.mxu0 %v1304
  %1322 = vmatprep.subr.mxu0 %v1308
  %1323 = vmatpush1.msra.mxu0 %v1307
  %1324 = vmatprep.subr.mxu0 %v1311
  %1325 = vmatpush1.msra.mxu0 %v1310
  %1326 = vmatprep.subr.mxu0 %v1314
  %1327 = vmatpush1.msra.mxu0 %v1313
  %1328 = vmatprep.subr.mxu0 0.0
  %1329 = vmatpush1.msra.mxu0 0.0
  %1330 = vmatprep.subr.mxu0 0.0
  %1331 = vmatpush1.msra.mxu0 0.0
  %1332 = vmatprep.subr.mxu0 0.0
  %1333 = vmatpush1.msra.mxu0 0.0
  %1334 = vmatprep.subr.mxu0 0.0
  %1335 = vmatpush1.msra.mxu0 0.0
  %1336 = vmatprep.subr.mxu0 0.0
  %1337 = vmatpush1.msra.mxu0 0.0
  %1338 = vmatprep.subr.mxu0 0.0
  %1339 = vmatpush1.msra.mxu0 0.0
  %1340 = vmatprep.subr.mxu0 0.0
  %1341 = vmatpush1.msra.mxu0 0.0
  %1342 = vmatprep.subr.mxu0 0.0
  %1343 = vmatpush1.msra.mxu0 0.0
  %1344 = vmatprep.subr.mxu0 0.0
  %1345 = vmatpush1.msra.mxu0 0.0
  %1346 = vmatprep.subr.mxu0 0.0
  %1347 = vmatpush1.msra.mxu0 0.0
  %1348 = vmatprep.subr.mxu0 0.0
  %1349 = vmatpush1.msra.mxu0 0.0
  %1350 = vmatprep.subr.mxu0 0.0
  %1351 = vmatpush1.msra.mxu0 0.0
  %1352 = vmatprep.subr.mxu0 0.0
  %1353 = vmatpush1.msra.mxu0 0.0
  %1354 = vmatprep.subr.mxu0 0.0
  %1355 = vmatpush1.msra.mxu0 0.0
  %1356 = vmatprep.subr.mxu0 0.0
  %1357 = vmatpush1.msra.mxu0 0.0
  %1358 = vmatprep.subr.mxu0 0.0
  %1359 = vmatpush1.msra.mxu0 0.0
  %1360 = vmatprep.subr.mxu0 0.0
  %1361 = vmatpush1.msra.mxu0 0.0
  %1362 = vmatprep.subr.mxu0 0.0
  %1363 = vmatpush1.msra.mxu0 0.0
  %1364 = vmatprep.subr.mxu0 0.0
  %1365 = vmatpush1.msra.mxu0 0.0
  %1366 = vmatprep.subr.mxu0 0.0
  %1367 = vmatpush1.msra.mxu0 0.0
  %1368 = vmatprep.subr.mxu0 0.0
  %1369 = vmatpush1.msra.mxu0 0.0
  %1370 = vmatprep.subr.mxu0 0.0
  %1371 = vmatpush1.msra.mxu0 0.0
  %1372 = vmatprep.subr.mxu0 0.0
  %1373 = vmatpush1.msra.mxu0 0.0
  %1374 = vmatprep.subr.mxu0 0.0
  %1375 = vmatpush1.msra.mxu0 0.0
  %1376 = vmatprep.subr.mxu0 0.0
  %1377 = vmatpush1.msra.mxu0 0.0
  %1378 = vmatprep.subr.mxu0 0.0
  %1379 = vmatpush1.msra.mxu0 0.0
  %1380 = vmatprep.subr.mxu0 0.0
  %1381 = vmatpush1.msra.mxu0 0.0
  %1382 = vmatprep.subr.mxu0 0.0
  %1383 = vmatpush1.msra.mxu0 0.0
  %1384 = vmatprep.mubr.f32.mxu0 0.0
  %1385 = vmatmul.mubr.f32.gmra.mrb[0].mxu0 %v1318
  %v1386 = vpop.f32.mrb[0].mxu0
  %v1387 = vadd.f32 0.0, %v1386
  %v1388 = vpop.f32.mrb[0].mxu0
  %v1389 = vadd.f32 0.0, %v1388
  %1390 = vdwg.mxu0
  %1391 = vmatprep.subr.mxu0 0.0
  %1392 = vmatpush1.msra.mxu0 %v1306
  %1393 = vmatprep.subr.mxu0 0.0
  %1394 = vmatpush1.msra.mxu0 %v1309
  %1395 = vmatprep.subr.mxu0 0.0
  %1396 = vmatpush1.msra.mxu0 %v1312
  %1397 = vmatprep.subr.mxu0 0.0
  %1398 = vmatpush1.msra.mxu0 %v1315
  %1399 = vmatprep.subr.mxu0 0.0
  %1400 = vmatpush1.msra.mxu0 0.0
  %1401 = vmatprep.subr.mxu0 0.0
  %1402 = vmatpush1.msra.mxu0 0.0
  %1403 = vmatprep.subr.mxu0 0.0
  %1404 = vmatpush1.msra.mxu0 0.0
  %1405 = vmatprep.subr.mxu0 0.0
  %1406 = vmatpush1.msra.mxu0 0.0
  %1407 = vmatprep.subr.mxu0 0.0
  %1408 = vmatpush1.msra.mxu0 0.0
  %1409 = vmatprep.subr.mxu0 0.0
  %1410 = vmatpush1.msra.mxu0 0.0
  %1411 = vmatprep.subr.mxu0 0.0
  %1412 = vmatpush1.msra.mxu0 0.0
  %1413 = vmatprep.subr.mxu0 0.0
  %1414 = vmatpush1.msra.mxu0 0.0
  %1415 = vmatprep.subr.mxu0 0.0
  %1416 = vmatpush1.msra.mxu0 0.0
  %1417 = vmatprep.subr.mxu0 0.0
  %1418 = vmatpush1.msra.mxu0 0.0
  %1419 = vmatprep.subr.mxu0 0.0
  %1420 = vmatpush1.msra.mxu0 0.0
  %1421 = vmatprep.subr.mxu0 0.0
  %1422 = vmatpush1.msra.mxu0 0.0
  %1423 = vmatprep.subr.mxu0 0.0
  %1424 = vmatpush1.msra.mxu0 0.0
  %1425 = vmatprep.subr.mxu0 0.0
  %1426 = vmatpush1.msra.mxu0 0.0
  %1427 = vmatprep.subr.mxu0 0.0
  %1428 = vmatpush1.msra.mxu0 0.0
  %1429 = vmatprep.subr.mxu0 0.0
  %1430 = vmatpush1.msra.mxu0 0.0
  %1431 = vmatprep.subr.mxu0 0.0
  %1432 = vmatpush1.msra.mxu0 0.0
  %1433 = vmatprep.subr.mxu0 0.0
  %1434 = vmatpush1.msra.mxu0 0.0
  %1435 = vmatprep.subr.mxu0 0.0
  %1436 = vmatpush1.msra.mxu0 0.0
  %1437 = vmatprep.subr.mxu0 0.0
  %1438 = vmatpush1.msra.mxu0 0.0
  %1439 = vmatprep.subr.mxu0 0.0
  %1440 = vmatpush1.msra.mxu0 0.0
  %1441 = vmatprep.subr.mxu0 0.0
  %1442 = vmatpush1.msra.mxu0 0.0
  %1443 = vmatprep.subr.mxu0 0.0
  %1444 = vmatpush1.msra.mxu0 0.0
  %1445 = vmatprep.subr.mxu0 0.0
  %1446 = vmatpush1.msra.mxu0 0.0
  %1447 = vmatprep.subr.mxu0 0.0
  %1448 = vmatpush1.msra.mxu0 0.0
  %1449 = vmatprep.subr.mxu0 0.0
  %1450 = vmatpush1.msra.mxu0 0.0
  %1451 = vmatprep.subr.mxu0 0.0
  %1452 = vmatpush1.msra.mxu0 0.0
  %1453 = vmatprep.subr.mxu0 0.0
  %1454 = vmatpush1.msra.mxu0 0.0
  %1455 = vmatprep.mubr.f32.mxu0 0.0
  %1456 = vmatmul.mubr.f32.gmra.mrb[0].mxu0 %v1318
  %v1457 = vpop.f32.mrb[0].mxu0
  %v1458 = vadd.f32 0.0, %v1457
  %v1459 = vpop.f32.mrb[0].mxu0
  %1460 = vdwg.mxu0
  %v1462 = vsel %vm1316, %v776, 0
  %1464 = vmatprep.subr.mxu0 %v1293
  %1465 = vmatpush1.msra.mxu0 %v1292
  %1466 = vmatprep.subr.mxu0 %v1296
  %1467 = vmatpush1.msra.mxu0 %v1295
  %1468 = vmatprep.subr.mxu0 %v1299
  %1469 = vmatpush1.msra.mxu0 %v1298
  %1470 = vmatprep.subr.mxu0 %v1302
  %1471 = vmatpush1.msra.mxu0 %v1301
  %1472 = vmatprep.subr.mxu0 0.0
  %1473 = vmatpush1.msra.mxu0 0.0
  %1474 = vmatprep.subr.mxu0 0.0
  %1475 = vmatpush1.msra.mxu0 0.0
  %1476 = vmatprep.subr.mxu0 0.0
  %1477 = vmatpush1.msra.mxu0 0.0
  %1478 = vmatprep.subr.mxu0 0.0
  %1479 = vmatpush1.msra.mxu0 0.0
  %1480 = vmatprep.subr.mxu0 0.0
  %1481 = vmatpush1.msra.mxu0 0.0
  %1482 = vmatprep.subr.mxu0 0.0
  %1483 = vmatpush1.msra.mxu0 0.0
  %1484 = vmatprep.subr.mxu0 0.0
  %1485 = vmatpush1.msra.mxu0 0.0
  %1486 = vmatprep.subr.mxu0 0.0
  %1487 = vmatpush1.msra.mxu0 0.0
  %1488 = vmatprep.subr.mxu0 0.0
  %1489 = vmatpush1.msra.mxu0 0.0
  %1490 = vmatprep.subr.mxu0 0.0
  %1491 = vmatpush1.msra.mxu0 0.0
  %1492 = vmatprep.subr.mxu0 0.0
  %1493 = vmatpush1.msra.mxu0 0.0
  %1494 = vmatprep.subr.mxu0 0.0
  %1495 = vmatpush1.msra.mxu0 0.0
  %1496 = vmatprep.subr.mxu0 0.0
  %1497 = vmatpush1.msra.mxu0 0.0
  %1498 = vmatprep.subr.mxu0 0.0
  %1499 = vmatpush1.msra.mxu0 0.0
  %1500 = vmatprep.subr.mxu0 0.0
  %1501 = vmatpush1.msra.mxu0 0.0
  %1502 = vmatprep.subr.mxu0 0.0
  %1503 = vmatpush1.msra.mxu0 0.0
  %1504 = vmatprep.subr.mxu0 0.0
  %1505 = vmatpush1.msra.mxu0 0.0
  %1506 = vmatprep.subr.mxu0 0.0
  %1507 = vmatpush1.msra.mxu0 0.0
  %1508 = vmatprep.subr.mxu0 0.0
  %1509 = vmatpush1.msra.mxu0 0.0
  %1510 = vmatprep.subr.mxu0 0.0
  %1511 = vmatpush1.msra.mxu0 0.0
  %1512 = vmatprep.subr.mxu0 0.0
  %1513 = vmatpush1.msra.mxu0 0.0
  %1514 = vmatprep.subr.mxu0 0.0
  %1515 = vmatpush1.msra.mxu0 0.0
  %1516 = vmatprep.subr.mxu0 0.0
  %1517 = vmatpush1.msra.mxu0 0.0
  %1518 = vmatprep.subr.mxu0 0.0
  %1519 = vmatpush1.msra.mxu0 0.0
  %1520 = vmatprep.subr.mxu0 0.0
  %1521 = vmatpush1.msra.mxu0 0.0
  %1522 = vmatprep.subr.mxu0 0.0
  %1523 = vmatpush1.msra.mxu0 0.0
  %1524 = vmatprep.subr.mxu0 0.0
  %1525 = vmatpush1.msra.mxu0 0.0
  %1526 = vmatprep.subr.mxu0 0.0
  %1527 = vmatpush1.msra.mxu0 0.0
  %1528 = vmatprep.mubr.f32.mxu0 0.0
  %1529 = vmatmul.mubr.f32.gmra.mrb[0].mxu0 %v1462
  %v1530 = vpop.f32.mrb[0].mxu0
  %v1531 = vadd.f32 %v1387, %v1530
  %v1532 = vpop.f32.mrb[0].mxu0
  %v1533 = vadd.f32 %v1389, %v1532
  %1534 = vdwg.mxu0
  %1535 = vmatprep.subr.mxu0 0.0
  %1536 = vmatpush1.msra.mxu0 %v1294
  %1537 = vmatprep.subr.mxu0 0.0
  %1538 = vmatpush1.msra.mxu0 %v1297
  %1539 = vmatprep.subr.mxu0 0.0
  %1540 = vmatpush1.msra.mxu0 %v1300
  %1541 = vmatprep.subr.mxu0 0.0
  %1542 = vmatpush1.msra.mxu0 %v1303
  %1543 = vmatprep.subr.mxu0 0.0
  %1544 = vmatpush1.msra.mxu0 0.0
  %1545 = vmatprep.subr.mxu0 0.0
  %1546 = vmatpush1.msra.mxu0 0.0
  %1547 = vmatprep.subr.mxu0 0.0
  %1548 = vmatpush1.msra.mxu0 0.0
  %1549 = vmatprep.subr.mxu0 0.0
  %1550 = vmatpush1.msra.mxu0 0.0
  %1551 = vmatprep.subr.mxu0 0.0
  %1552 = vmatpush1.msra.mxu0 0.0
  %1553 = vmatprep.subr.mxu0 0.0
  %1554 = vmatpush1.msra.mxu0 0.0
  %1555 = vmatprep.subr.mxu0 0.0
  %1556 = vmatpush1.msra.mxu0 0.0
  %1557 = vmatprep.subr.mxu0 0.0
  %1558 = vmatpush1.msra.mxu0 0.0
  %1559 = vmatprep.subr.mxu0 0.0
  %1560 = vmatpush1.msra.mxu0 0.0
  %1561 = vmatprep.subr.mxu0 0.0
  %1562 = vmatpush1.msra.mxu0 0.0
  %1563 = vmatprep.subr.mxu0 0.0
  %1564 = vmatpush1.msra.mxu0 0.0
  %1565 = vmatprep.subr.mxu0 0.0
  %1566 = vmatpush1.msra.mxu0 0.0
  %1567 = vmatprep.subr.mxu0 0.0
  %1568 = vmatpush1.msra.mxu0 0.0
  %1569 = vmatprep.subr.mxu0 0.0
  %1570 = vmatpush1.msra.mxu0 0.0
  %1571 = vmatprep.subr.mxu0 0.0
  %1572 = vmatpush1.msra.mxu0 0.0
  %1573 = vmatprep.subr.mxu0 0.0
  %1574 = vmatpush1.msra.mxu0 0.0
  %1575 = vmatprep.subr.mxu0 0.0
  %1576 = vmatpush1.msra.mxu0 0.0
  %1577 = vmatprep.subr.mxu0 0.0
  %1578 = vmatpush1.msra.mxu0 0.0
  %1579 = vmatprep.subr.mxu0 0.0
  %1580 = vmatpush1.msra.mxu0 0.0
  %1581 = vmatprep.subr.mxu0 0.0
  %1582 = vmatpush1.msra.mxu0 0.0
  %1583 = vmatprep.subr.mxu0 0.0
  %1584 = vmatpush1.msra.mxu0 0.0
  %1585 = vmatprep.subr.mxu0 0.0
  %1586 = vmatpush1.msra.mxu0 0.0
  %1587 = vmatprep.subr.mxu0 0.0
  %1588 = vmatpush1.msra.mxu0 0.0
  %1589 = vmatprep.subr.mxu0 0.0
  %1590 = vmatpush1.msra.mxu0 0.0
  %1591 = vmatprep.subr.mxu0 0.0
  %1592 = vmatpush1.msra.mxu0 0.0
  %1593 = vmatprep.subr.mxu0 0.0
  %1594 = vmatpush1.msra.mxu0 0.0
  %1595 = vmatprep.subr.mxu0 0.0
  %1596 = vmatpush1.msra.mxu0 0.0
  %1597 = vmatprep.subr.mxu0 0.0
  %1598 = vmatpush1.msra.mxu0 0.0
  %1599 = vmatprep.mubr.f32.mxu0 0.0
  %1600 = vmatmul.mubr.f32.gmra.mrb[0].mxu0 %v1462
  %v1601 = vpop.f32.mrb[0].mxu0
  %v1602 = vadd.f32 %v1458, %v1601
  %v1603 = vpop.f32.mrb[0].mxu0
  %1604 = vdwg.mxu0
  %v1605 = vld [vmem:[%s7] sm:$0x7]
  %v1607 = vlaneseq
  %v1608 = vshrl.u32 %v1607, 7
  %v1609 = vsub.s32 0, %v1608
  %v1610 = vrot.slane %v1605, %v1609
  %v1611 = vlaneseq
  %v1612 = vshrl.u32 %v1611, 7
  %v1613 = vsub.s32 1, %v1612
  %v1614 = vrot.slane %v1605, %v1613
  %v1615 = vlaneseq
  %v1616 = vshrl.u32 %v1615, 7
  %v1617 = vsub.s32 2, %v1616
  %v1618 = vrot.slane %v1605, %v1617
  %v1622 = vadd.f32 %v1531, %v1610
  %v1623 = vadd.f32 %v1533, %v1614
  %v1624 = vadd.f32 %v1602, %v1618
  %v1628 = vrot.slane %v1622, 2
  %v1629 = vrot.slane %v1623, 2
  %v1630 = vrot.slane %v1624, 2
  %v1634 = vmul.f32 %v1622, %v1628
  %v1635 = vmul.f32 %v1623, %v1629
  %v1636 = vmul.f32 %v1624, %v1630
  %vm1637 = vcmask 1041408
  %v1638 = vsel %vm1637, %v1634, 0.0
  %v1639 = vsel %vm1637, %v1635, 0.0
  %v1640 = vadd.f32 %v1638, %v1639
  %v1641 = vsel %vm1637, %v1636, 0.0
  %v1642 = vadd.f32 %v1640, %v1641
  %1643 = vadd.xlane.f32.xlu0 %v1642
  %v1644 = vpop.xlane.xlu0 %1643
  %v1645 = vmul.f32 %v1622, %v1622
  %v1646 = vmul.f32 %v1623, %v1623
  %v1647 = vmul.f32 %v1624, %v1624
  %v1648 = vsel %vm1637, %v1645, 0.0
  %v1649 = vsel %vm1637, %v1646, 0.0
  %v1650 = vadd.f32 %v1648, %v1649
  %v1651 = vsel %vm1637, %v1647, 0.0
  %v1652 = vadd.f32 %v1650, %v1651
  %1653 = vadd.xlane.f32.xlu0 %v1652
  %v1654 = vpop.xlane.xlu0 %1653
  %vm1655 = vcmask 1043458
  %v1656 = vsel %vm1655, %v1645, 0.0
  %v1657 = vsel %vm1655, %v1646, 0.0
  %v1658 = vadd.f32 %v1656, %v1657
  %v1659 = vsel %vm1655, %v1647, 0.0
  %v1660 = vadd.f32 %v1658, %v1659
  %1661 = vadd.xlane.f32.xlu0 %v1660
  %v1662 = vpop.xlane.xlu0 %1661
  %v1664 = vrot.slane %v1662, 2
  %v1666 = vmul.f32 %v1654, %v1664
  %v1667 = vmax.f32 %v1666, 1e-16
  %v1668 = vrsqrt.pop %v1667
  %v1669 = vmul.f32 %v1644, %v1668
  %vm1670 = vcmask 1024
  %1671 = vst.msk [vmem:[%s8] sm:$0x3] %vm1670, %v1669
  // Predicated region
  $region34: #{siamese_forward.1} parent=0 // pred_check
    _
  $region35: #{siamese_forward.1} parent=0 // pred_check_branch
    %1673 = sbr.rel (0) target = $region37
  $region36: #{siamese_forward.1} parent=0 // pred_region
    _
  $region37: #{siamese_forward.1} parent=0 // pred_fallthru
    _
  // Predicated region
  $region38: #{siamese_forward.1} parent=0 // pred_check
    _
  $region39: #{siamese_forward.1} parent=0 // pred_check_branch
    %1675 = sbr.rel (0) target = $region41
  $region40: #{siamese_forward.1} parent=0 // pred_region
    _
  $region41: #{siamese_forward.1} parent=0 // pred_fallthru
    _

</llo_original>
